<compile_context>
chip_gen: v7x
topology: tpu7x:2x2x1
jax: 0.10.0
libtpu: 0.0.40
codegen_flags: <defaults>
</compile_context>

<pallas_src>
import functools

import numpy as np
import jax
import jax.numpy as jnp
from jax import lax
from jax.experimental import pallas as pl
from jax.experimental.pallas import tpu as pltpu

K = 3  # kernel_size


def _make_masks(H, W, HW_p):
    """(9, 2*HW_p) 0/1 f32 destination-validity masks for the 3x3 taps on the flat
    [avg | max] row.  Padded lanes (>= H*W within each plane) are invalid for all taps."""
    k = np.arange(HW_p)
    row = k // W
    col = k % W
    real = k < H * W
    rows = []
    for di in range(K):
        for dj in range(K):
            r = row + (di - 1)
            c = col + (dj - 1)
            rows.append(real & (r >= 0) & (r < H) & (c >= 0) & (c < W))
    m = np.stack(rows, axis=0).astype(np.float32)            # (9, HW_p)
    return jnp.asarray(np.concatenate([m, m], axis=1))       # (9, 2*HW_p)


def pool_conv_kernel(x_ref, w1_ref, w2_ref, b2_ref, masks_ref, o_ref,
                     sum_ref, max_ref, taps_ref, *, C, HW_p, shifts):
    c = pl.program_id(1)
    last = pl.num_programs(1) - 1

    x_tile = x_ref[0]                            # (c_tile, HW_p), native dtype
    c_tile = x_tile.shape[0]

    @pl.when(c == 0)
    def _():
        sum_ref[...] = jnp.zeros_like(sum_ref)
        max_ref[...] = jnp.full_like(max_ref, -jnp.inf)

    # Channel mean on the MXU: (1, c_tile) @ (c_tile, HW_p).  The weight row carries
    # 1/C for real channels and 0 for the edge-replicated padding channels.
    ch = lax.broadcasted_iota(jnp.int32, (1, c_tile), 1) + c * c_tile
    w_row = jnp.where(ch < C, jnp.float32(1.0 / C), jnp.float32(0.0))
    sum_ref[...] += jnp.dot(w_row, x_tile, preferred_element_type=jnp.float32)

    # Channel max stays elementwise / cross-sublane (native dtype, no full-block cast).
    max_ref[...] = jnp.maximum(
        max_ref[...], jnp.max(x_tile, axis=0, keepdims=True).astype(jnp.float32))

    @pl.when(c == last)
    def _():
        L = 2 * HW_p
        pcat = jnp.concatenate([sum_ref[...], max_ref[...]], axis=1)   # (1, L) [avg|max]
        masks = masks_ref[...]                                          # (9, L)

        # conv1 taps (9 masked rolls) + all-ones bias tap, written into VMEM scratch.
        for t in range(K * K):
            off = shifts[t]
            r = pcat if off == 0 else pltpu.roll(pcat, (-off) % L, axis=1)
            taps_ref[t:t + 1, :] = r * masks[t:t + 1, :]
        taps_ref[K * K:K * K + 1, :] = jnp.ones((1, L), jnp.float32)

        # conv1 (1 -> hidden, 3x3, pad 1) + ReLU, both planes at once, bias folded in.
        h = jnp.dot(w1_ref[...], taps_ref[...], preferred_element_type=jnp.float32)
        h = jnp.maximum(h, 0.0)                          # (hidden, L)

        # conv2 is linear: mlp(avg)+mlp(max) = 2*b2 + conv2_nobias(h_avg + h_max).
        h_sum = h[:, :HW_p] + h[:, HW_p:]                # (hidden, HW_p)

        s = jnp.dot(w2_ref[...], h_sum, preferred_element_type=jnp.float32)  # (9, HW_p)
        acc = jnp.zeros((1, HW_p), jnp.float32)
        for t in range(K * K):
            off = shifts[t]
            row = s[t:t + 1, :]
            r = row if off == 0 else pltpu.roll(row, (-off) % HW_p, axis=1)
            acc = acc + r * masks[t:t + 1, :HW_p]

        o_ref[0] = (acc + 2.0 * b2_ref[...]).astype(o_ref.dtype)


def pool_conv(x, w1, b1, w2, b2, *, c_tile_bytes=2 * 1024 * 1024):
    N, C, H, W = x.shape
    hidden = w1.shape[0]
    HW = H * W
    HW_p = ((HW + 127) // 128) * 128

    # Flatten spatial, pad lanes up to a multiple of 128 (unmasked stores).
    x_flat = x.reshape(N, C, HW)
    if HW_p != HW:
        x_flat = jnp.pad(x_flat, ((0, 0), (0, 0), (0, HW_p - HW)))

    # Choose the channel tile: single tile for small C, otherwise a multiple of 8 that
    # keeps each (double-buffered) input block around ~2 MiB — pipelines on v5e/v6e and
    # fits comfortably under v7x's 64 MiB VMEM without raising vmem_limit_bytes.
    bytes_per = x.dtype.itemsize
    max_c = max(8, c_tile_bytes // (HW_p * bytes_per))
    if C <= max_c:
        c_tile, c_pad = C, C
    else:
        c_tile = int(max(8, (max_c // 8) * 8))
        c_pad = ((C + c_tile - 1) // c_tile) * c_tile
    if c_pad != C:
        # Edge-replicate padded channels: max unaffected; mean weights zero them out.
        x_flat = jnp.pad(x_flat, ((0, 0), (0, c_pad - C), (0, 0)), mode='edge')
    num_c = c_pad // c_tile

    # Weights: fold b1 into conv1 as a 10th "ones" tap column.
    w1m = jnp.concatenate(
        [w1.reshape(hidden, K * K), b1.reshape(hidden, 1)], axis=1).astype(jnp.float32)
    w2m = w2.reshape(hidden, K * K).T.astype(jnp.float32)   # (9, hidden)
    b2c = b2.reshape(1, 1).astype(jnp.float32)              # (1, 1)

    masks = _make_masks(H, W, HW_p)                         # (9, 2*HW_p), resident
    shifts = tuple((di - 1) * W + (dj - 1) for di in range(K) for dj in range(K))

    kernel = functools.partial(pool_conv_kernel, C=C, HW_p=HW_p, shifts=shifts)
    out = pl.pallas_call(
        kernel,
        out_shape=jax.ShapeDtypeStruct((N, 1, HW_p), jnp.float32),
        grid_spec=pltpu.PrefetchScalarGridSpec(
            num_scalar_prefetch=0,
            grid=(N, num_c),
            in_specs=[
                pl.BlockSpec((1, c_tile, HW_p), lambda n, c: (n, c, 0)),    # x tile
                pl.BlockSpec((hidden, K * K + 1), lambda n, c: (0, 0)),     # w1|b1
                pl.BlockSpec((K * K, hidden), lambda n, c: (0, 0)),         # w2^T
                pl.BlockSpec((1, 1), lambda n, c: (0, 0)),                  # b2
                pl.BlockSpec((K * K, 2 * HW_p), lambda n, c: (0, 0)),       # tap masks
            ],
            out_specs=pl.BlockSpec((1, 1, HW_p), lambda n, c: (n, 0, 0)),
            scratch_shapes=[
                pltpu.VMEM((1, HW_p), jnp.float32),            # running channel sum*1/C
                pltpu.VMEM((1, HW_p), jnp.float32),            # running channel max
                pltpu.VMEM((K * K + 1, 2 * HW_p), jnp.float32),  # conv1 tap matrix
            ],
        ),
        compiler_params=pltpu.CompilerParams(
            dimension_semantics=("parallel", "arbitrary")),
    )(x_flat, w1m, w2m, b2c, masks)
    return out[:, :, :HW].reshape(N, 1, H, W)


def ref_forward(x, w1, b1, w2, b2):
    """Pure-JAX reference (same math as the PyTorch module)."""
    def conv(p, w, b):
        o = lax.conv_general_dilated(
            p, w, window_strides=(1, 1), padding="SAME",
            dimension_numbers=("NCHW", "OIHW", "NCHW"))
        return o + b[None, :, None, None]

    def mlp(p):
        h = jnp.maximum(conv(p, w1, b1), 0.0)
        return conv(h, w2, b2)

    avg = jnp.mean(x, axis=1, keepdims=True)
    mx = jnp.max(x, axis=1, keepdims=True)
    return mlp(avg) + mlp(mx)


if __name__ == "__main__":
    def run_case(key, N, C, H, W, hidden, **kw):
        k1, k2, k3, k4, k5 = jax.random.split(key, 5)
        x = jax.random.normal(k1, (N, C, H, W), jnp.float32)
        w1 = 0.1 * jax.random.normal(k2, (hidden, 1, K, K), jnp.float32)   # Conv(1 -> hidden)
        b1 = 0.1 * jax.random.normal(k3, (hidden,), jnp.float32)
        w2 = 0.1 * jax.random.normal(k4, (1, hidden, K, K), jnp.float32)   # Conv(hidden -> 1)
        b2 = 0.1 * jax.random.normal(k5, (1,), jnp.float32)

        y = jax.block_until_ready(pool_conv(x, w1, b1, w2, b2, **kw))
        y_ref = ref_forward(x, w1, b1, w2, b2)
        assert y.shape == (N, 1, H, W), y.shape
        err = float(jnp.max(jnp.abs(y - y_ref)))
        assert jnp.allclose(y, y_ref, rtol=1e-4, atol=1e-4), err

    key = jax.random.PRNGKey(0)
    ka, kb, kc, kd = jax.random.split(key, 4)
    run_case(ka, N=2, C=4, H=16, W=16, hidden=16)    # module-default shapes
    run_case(kb, N=3, C=5, H=8, W=16, hidden=8)      # asymmetric H/W, odd C/N
    run_case(kc, N=2, C=6, H=14, W=14, hidden=8)     # HW not a multiple of 128 (lane pad)
    # Force the multi-C-tile path (small tile budget -> c_tile=8, C padded 20->24, 3 tiles).
    run_case(kd, N=2, C=20, H=16, W=16, hidden=16, c_tile_bytes=8 * 1024)
    print("KERNEL_OK")
</pallas_src>

<mosaic_0001>
module attributes {stable_mosaic.version = 11 : i64} {
  func.func @pool_conv_kernel(%arg0: i32, %arg1: i32, %arg2: memref<1x4x256xf32, #tpu.memory_space<vmem>>, %arg3: memref<16x10xf32, #tpu.memory_space<vmem>>, %arg4: memref<9x16xf32, #tpu.memory_space<vmem>>, %arg5: memref<1x1xf32, #tpu.memory_space<vmem>>, %arg6: memref<9x512xf32, #tpu.memory_space<vmem>>, %arg7: memref<1x1x256xf32, #tpu.memory_space<vmem>>, %arg8: memref<1x256xf32, #tpu.memory_space<vmem>>, %arg9: memref<1x256xf32, #tpu.memory_space<vmem>>, %arg10: memref<10x512xf32, #tpu.memory_space<vmem>>) attributes {dimension_semantics = [#tpu.dimension_semantics<parallel>, #tpu.dimension_semantics<arbitrary>], iteration_bounds = array<i64: 2, 1>, scalar_prefetch = 0 : i64, scratch_operands = 3 : i64, tpu.core_type = #tpu.core_type<tc>, window_params = [{transform_indices = @transform_0, window_bounds = array<i64: 1, 4, 256>}, {pipeline_mode = #tpu.pipeline_mode<synchronous>, transform_indices = @transform_1, window_bounds = array<i64: 16, 10>}, {pipeline_mode = #tpu.pipeline_mode<synchronous>, transform_indices = @transform_2, window_bounds = array<i64: 9, 16>}, {pipeline_mode = #tpu.pipeline_mode<synchronous>, transform_indices = @transform_3, window_bounds = array<i64: 1, 1>}, {pipeline_mode = #tpu.pipeline_mode<synchronous>, transform_indices = @transform_4, window_bounds = array<i64: 9, 512>}, {transform_indices = @transform_5, window_bounds = array<i64: 1, 1, 256>}]} {
    %c0 = arith.constant 0 : index
    %c0_0 = arith.constant 0 : index
    %c0_1 = arith.constant 0 : index
    %0 = vector.load %arg2[%c0, %c0_0, %c0_1] : memref<1x4x256xf32, #tpu.memory_space<vmem>>, vector<1x4x256xf32>
    %1 = vector.shape_cast %0 : vector<1x4x256xf32> to vector<4x256xf32>
    %c0_i32 = arith.constant 0 : i32
    %2 = arith.cmpi eq, %arg1, %c0_i32 : i32
    %3 = arith.extui %2 : i1 to i32
    %c0_i32_2 = arith.constant 0 : i32
    %4 = arith.cmpi ne, %3, %c0_i32_2 : i32
    scf.if %4 {
      %cst_17 = arith.constant 0.000000e+00 : f32
      %26 = vector.broadcast %cst_17 : f32 to vector<1x256xf32>
      %c0_18 = arith.constant 0 : index
      %c0_19 = arith.constant 0 : index
      %27 = vector.load %arg8[%c0_18, %c0_19] : memref<1x256xf32, #tpu.memory_space<vmem>>, vector<1x256xf32>
      tpu.vector_store %arg8[%c0_18, %c0_19], %26 {strides = array<i32>} : memref<1x256xf32, #tpu.memory_space<vmem>>, vector<1x256xf32>,
      %cst_20 = arith.constant 0xFF800000 : f32
      %28 = vector.broadcast %cst_20 : f32 to vector<1x256xf32>
      %c0_21 = arith.constant 0 : index
      %c0_22 = arith.constant 0 : index
      %29 = vector.load %arg9[%c0_21, %c0_22] : memref<1x256xf32, #tpu.memory_space<vmem>>, vector<1x256xf32>
      tpu.vector_store %arg9[%c0_21, %c0_22], %28 {strides = array<i32>} : memref<1x256xf32, #tpu.memory_space<vmem>>, vector<1x256xf32>,
    } else {
    }
    %5 = tpu.iota {dimensions = array<i32: 1>} : vector<1x4xi32>
    %c4_i32 = arith.constant 4 : i32
    %6 = arith.muli %arg1, %c4_i32 : i32
    %7 = vector.broadcast %6 : i32 to vector<1x4xi32>
    %8 = arith.addi %5, %7 : vector<1x4xi32>
    %c4_i32_3 = arith.constant 4 : i32
    %9 = vector.broadcast %c4_i32_3 : i32 to vector<1x4xi32>
    %10 = arith.cmpi slt, %8, %9 : vector<1x4xi32>
    %cst = arith.constant 2.500000e-01 : f32
    %cst_4 = arith.constant 0.000000e+00 : f32
    %11 = vector.broadcast %cst : f32 to vector<1x4xf32>
    %12 = vector.broadcast %cst_4 : f32 to vector<1x4xf32>
    %13 = arith.select %10, %11, %12 : vector<1x4xi1>, vector<1x4xf32>
    %c0_5 = arith.constant 0 : index
    %c0_6 = arith.constant 0 : index
    %14 = vector.load %arg8[%c0_5, %c0_6] : memref<1x256xf32, #tpu.memory_space<vmem>>, vector<1x256xf32>
    %cst_7 = arith.constant dense<0.000000e+00> : vector<1x256xf32>
    %15 = tpu.matmul %13, %1, %cst_7 {dimension_numbers = #tpu.dot_dimension_numbers<[1], [0], [0], [1], [0, 0, 1, 1], [], []>} : vector<1x4xf32>, vector<4x256xf32>, vector<1x256xf32> -> vector<1x256xf32>
    %16 = arith.addf %14, %15 : vector<1x256xf32>
    %c0_8 = arith.constant 0 : index
    %c0_9 = arith.constant 0 : index
    %17 = vector.load %arg8[%c0_8, %c0_9] : memref<1x256xf32, #tpu.memory_space<vmem>>, vector<1x256xf32>
    tpu.vector_store %arg8[%c0_8, %c0_9], %16 {strides = array<i32>} : memref<1x256xf32, #tpu.memory_space<vmem>>, vector<1x256xf32>,
    %c0_10 = arith.constant 0 : index
    %c0_11 = arith.constant 0 : index
    %18 = vector.load %arg9[%c0_10, %c0_11] : memref<1x256xf32, #tpu.memory_space<vmem>>, vector<1x256xf32>
    %cst_12 = arith.constant dense<0xFF800000> : vector<256xf32>
    %19 = vector.multi_reduction <maximumf>, %1, %cst_12 [0] : vector<4x256xf32> to vector<256xf32>
    %20 = vector.shape_cast %19 : vector<256xf32> to vector<1x256xf32>
    %21 = arith.maximumf %18, %20 : vector<1x256xf32>
    %c0_13 = arith.constant 0 : index
    %c0_14 = arith.constant 0 : index
    %22 = vector.load %arg9[%c0_13, %c0_14] : memref<1x256xf32, #tpu.memory_space<vmem>>, vector<1x256xf32>
    tpu.vector_store %arg9[%c0_13, %c0_14], %21 {strides = array<i32>} : memref<1x256xf32, #tpu.memory_space<vmem>>, vector<1x256xf32>,
    %c0_i32_15 = arith.constant 0 : i32
    %23 = arith.cmpi eq, %arg1, %c0_i32_15 : i32
    %24 = arith.extui %23 : i1 to i32
    %c0_i32_16 = arith.constant 0 : i32
    %25 = arith.cmpi ne, %24, %c0_i32_16 : i32
    scf.if %25 {
      %c0_17 = arith.constant 0 : index
      %c0_18 = arith.constant 0 : index
      %26 = vector.load %arg8[%c0_17, %c0_18] : memref<1x256xf32, #tpu.memory_space<vmem>>, vector<1x256xf32>
      %c0_19 = arith.constant 0 : index
      %c0_20 = arith.constant 0 : index
      %27 = vector.load %arg9[%c0_19, %c0_20] : memref<1x256xf32, #tpu.memory_space<vmem>>, vector<1x256xf32>
      %28 = tpu.concatenate %26, %27 in 1 : vector<1x256xf32>, vector<1x256xf32> -> vector<1x512xf32>
      %c0_21 = arith.constant 0 : index
      %c0_22 = arith.constant 0 : index
      %29 = vector.load %arg6[%c0_21, %c0_22] : memref<9x512xf32, #tpu.memory_space<vmem>>, vector<9x512xf32>
      %c17_i32 = arith.constant 17 : i32
      %30 = tpu.dynamic_rotate %28 by %c17_i32 dim 1 : vector<1x512xf32>, i32 -> vector<1x512xf32>
      %31 = vector.extract_strided_slice %29 {offsets = [0, 0], sizes = [1, 512], strides = [1, 1]} : vector<9x512xf32> to vector<1x512xf32>
      %32 = arith.mulf %30, %31 : vector<1x512xf32>
      %c0_23 = arith.constant 0 : index
      %c0_24 = arith.constant 0 : index
      %33 = vector.load %arg10[%c0_23, %c0_24] : memref<10x512xf32, #tpu.memory_space<vmem>>, vector<1x512xf32>
      tpu.vector_store %arg10[%c0_23, %c0_24], %32 {strides = array<i32>} : memref<10x512xf32, #tpu.memory_space<vmem>>, vector<1x512xf32>,
      %c16_i32 = arith.constant 16 : i32
      %34 = tpu.dynamic_rotate %28 by %c16_i32 dim 1 : vector<1x512xf32>, i32 -> vector<1x512xf32>
      %35 = vector.extract_strided_slice %29 {offsets = [1, 0], sizes = [1, 512], strides = [1, 1]} : vector<9x512xf32> to vector<1x512xf32>
      %36 = arith.mulf %34, %35 : vector<1x512xf32>
      %c1 = arith.constant 1 : index
      %c0_25 = arith.constant 0 : index
      %37 = vector.load %arg10[%c1, %c0_25] : memref<10x512xf32, #tpu.memory_space<vmem>>, vector<1x512xf32>
      tpu.vector_store %arg10[%c1, %c0_25], %36 {strides = array<i32>} : memref<10x512xf32, #tpu.memory_space<vmem>>, vector<1x512xf32>,
      %c15_i32 = arith.constant 15 : i32
      %38 = tpu.dynamic_rotate %28 by %c15_i32 dim 1 : vector<1x512xf32>, i32 -> vector<1x512xf32>
      %39 = vector.extract_strided_slice %29 {offsets = [2, 0], sizes = [1, 512], strides = [1, 1]} : vector<9x512xf32> to vector<1x512xf32>
      %40 = arith.mulf %38, %39 : vector<1x512xf32>
      %c2 = arith.constant 2 : index
      %c0_26 = arith.constant 0 : index
      %41 = vector.load %arg10[%c2, %c0_26] : memref<10x512xf32, #tpu.memory_space<vmem>>, vector<1x512xf32>
      tpu.vector_store %arg10[%c2, %c0_26], %40 {strides = array<i32>} : memref<10x512xf32, #tpu.memory_space<vmem>>, vector<1x512xf32>,
      %c1_i32 = arith.constant 1 : i32
      %42 = tpu.dynamic_rotate %28 by %c1_i32 dim 1 : vector<1x512xf32>, i32 -> vector<1x512xf32>
      %43 = vector.extract_strided_slice %29 {offsets = [3, 0], sizes = [1, 512], strides = [1, 1]} : vector<9x512xf32> to vector<1x512xf32>
      %44 = arith.mulf %42, %43 : vector<1x512xf32>
      %c3 = arith.constant 3 : index
      %c0_27 = arith.constant 0 : index
      %45 = vector.load %arg10[%c3, %c0_27] : memref<10x512xf32, #tpu.memory_space<vmem>>, vector<1x512xf32>
      tpu.vector_store %arg10[%c3, %c0_27], %44 {strides = array<i32>} : memref<10x512xf32, #tpu.memory_space<vmem>>, vector<1x512xf32>,
      %46 = vector.extract_strided_slice %29 {offsets = [4, 0], sizes = [1, 512], strides = [1, 1]} : vector<9x512xf32> to vector<1x512xf32>
      %47 = arith.mulf %28, %46 : vector<1x512xf32>
      %c4 = arith.constant 4 : index
      %c0_28 = arith.constant 0 : index
      %48 = vector.load %arg10[%c4, %c0_28] : memref<10x512xf32, #tpu.memory_space<vmem>>, vector<1x512xf32>
      tpu.vector_store %arg10[%c4, %c0_28], %47 {strides = array<i32>} : memref<10x512xf32, #tpu.memory_space<vmem>>, vector<1x512xf32>,
      %c511_i32 = arith.constant 511 : i32
      %49 = tpu.dynamic_rotate %28 by %c511_i32 dim 1 : vector<1x512xf32>, i32 -> vector<1x512xf32>
      %50 = vector.extract_strided_slice %29 {offsets = [5, 0], sizes = [1, 512], strides = [1, 1]} : vector<9x512xf32> to vector<1x512xf32>
      %51 = arith.mulf %49, %50 : vector<1x512xf32>
      %c5 = arith.constant 5 : index
      %c0_29 = arith.constant 0 : index
      %52 = vector.load %arg10[%c5, %c0_29] : memref<10x512xf32, #tpu.memory_space<vmem>>, vector<1x512xf32>
      tpu.vector_store %arg10[%c5, %c0_29], %51 {strides = array<i32>} : memref<10x512xf32, #tpu.memory_space<vmem>>, vector<1x512xf32>,
      %c497_i32 = arith.constant 497 : i32
      %53 = tpu.dynamic_rotate %28 by %c497_i32 dim 1 : vector<1x512xf32>, i32 -> vector<1x512xf32>
      %54 = vector.extract_strided_slice %29 {offsets = [6, 0], sizes = [1, 512], strides = [1, 1]} : vector<9x512xf32> to vector<1x512xf32>
      %55 = arith.mulf %53, %54 : vector<1x512xf32>
      %c6 = arith.constant 6 : index
      %c0_30 = arith.constant 0 : index
      %56 = vector.load %arg10[%c6, %c0_30] : memref<10x512xf32, #tpu.memory_space<vmem>>, vector<1x512xf32>
      tpu.vector_store %arg10[%c6, %c0_30], %55 {strides = array<i32>} : memref<10x512xf32, #tpu.memory_space<vmem>>, vector<1x512xf32>,
      %c496_i32 = arith.constant 496 : i32
      %57 = tpu.dynamic_rotate %28 by %c496_i32 dim 1 : vector<1x512xf32>, i32 -> vector<1x512xf32>
      %58 = vector.extract_strided_slice %29 {offsets = [7, 0], sizes = [1, 512], strides = [1, 1]} : vector<9x512xf32> to vector<1x512xf32>
      %59 = arith.mulf %57, %58 : vector<1x512xf32>
      %c7 = arith.constant 7 : index
      %c0_31 = arith.constant 0 : index
      %60 = vector.load %arg10[%c7, %c0_31] : memref<10x512xf32, #tpu.memory_space<vmem>>, vector<1x512xf32>
      tpu.vector_store %arg10[%c7, %c0_31], %59 {strides = array<i32>} : memref<10x512xf32, #tpu.memory_space<vmem>>, vector<1x512xf32>,
      %c495_i32 = arith.constant 495 : i32
      %61 = tpu.dynamic_rotate %28 by %c495_i32 dim 1 : vector<1x512xf32>, i32 -> vector<1x512xf32>
      %62 = vector.extract_strided_slice %29 {offsets = [8, 0], sizes = [1, 512], strides = [1, 1]} : vector<9x512xf32> to vector<1x512xf32>
      %63 = arith.mulf %61, %62 : vector<1x512xf32>
      %c8 = arith.constant 8 : index
      %c0_32 = arith.constant 0 : index
      %64 = vector.load %arg10[%c8, %c0_32] : memref<10x512xf32, #tpu.memory_space<vmem>>, vector<1x512xf32>
      tpu.vector_store %arg10[%c8, %c0_32], %63 {strides = array<i32>} : memref<10x512xf32, #tpu.memory_space<vmem>>, vector<1x512xf32>,
      %cst_33 = arith.constant 1.000000e+00 : f32
      %65 = vector.broadcast %cst_33 : f32 to vector<1x512xf32>
      %c9 = arith.constant 9 : index
      %c0_34 = arith.constant 0 : index
      %66 = vector.load %arg10[%c9, %c0_34] : memref<10x512xf32, #tpu.memory_space<vmem>>, vector<1x512xf32>
      tpu.vector_store %arg10[%c9, %c0_34], %65 {strides = array<i32>} : memref<10x512xf32, #tpu.memory_space<vmem>>, vector<1x512xf32>,
      %c0_35 = arith.constant 0 : index
      %c0_36 = arith.constant 0 : index
      %67 = vector.load %arg3[%c0_35, %c0_36] : memref<16x10xf32, #tpu.memory_space<vmem>>, vector<16x10xf32>
      %c0_37 = arith.constant 0 : index
      %c0_38 = arith.constant 0 : index
      %68 = vector.load %arg10[%c0_37, %c0_38] : memref<10x512xf32, #tpu.memory_space<vmem>>, vector<10x512xf32>
      %cst_39 = arith.constant dense<0.000000e+00> : vector<16x512xf32>
      %69 = tpu.matmul %67, %68, %cst_39 {dimension_numbers = #tpu.dot_dimension_numbers<[1], [0], [0], [1], [0, 0, 1, 1], [], []>} : vector<16x10xf32>, vector<10x512xf32>, vector<16x512xf32> -> vector<16x512xf32>
      %cst_40 = arith.constant 0.000000e+00 : f32
      %70 = vector.broadcast %cst_40 : f32 to vector<16x512xf32>
      %71 = arith.maximumf %69, %70 : vector<16x512xf32>
      %72 = vector.extract_strided_slice %71 {offsets = [0, 0], sizes = [16, 256], strides = [1, 1]} : vector<16x512xf32> to vector<16x256xf32>
      %73 = vector.extract_strided_slice %71 {offsets = [0, 256], sizes = [16, 256], strides = [1, 1]} : vector<16x512xf32> to vector<16x256xf32>
      %74 = arith.addf %72, %73 : vector<16x256xf32>
      %c0_41 = arith.constant 0 : index
      %c0_42 = arith.constant 0 : index
      %75 = vector.load %arg4[%c0_41, %c0_42] : memref<9x16xf32, #tpu.memory_space<vmem>>, vector<9x16xf32>
      %cst_43 = arith.constant dense<0.000000e+00> : vector<9x256xf32>
      %76 = tpu.matmul %75, %74, %cst_43 {dimension_numbers = #tpu.dot_dimension_numbers<[1], [0], [0], [1], [0, 0, 1, 1], [], []>} : vector<9x16xf32>, vector<16x256xf32>, vector<9x256xf32> -> vector<9x256xf32>
      %cst_44 = arith.constant 0.000000e+00 : f32
      %77 = vector.broadcast %cst_44 : f32 to vector<1x256xf32>
      %78 = vector.extract_strided_slice %76 {offsets = [0, 0], sizes = [1, 256], strides = [1, 1]} : vector<9x256xf32> to vector<1x256xf32>
      %c17_i32_45 = arith.constant 17 : i32
      %79 = tpu.dynamic_rotate %78 by %c17_i32_45 dim 1 : vector<1x256xf32>, i32 -> vector<1x256xf32>
      %80 = vector.extract_strided_slice %29 {offsets = [0, 0], sizes = [1, 256], strides = [1, 1]} : vector<9x512xf32> to vector<1x256xf32>
      %81 = arith.mulf %79, %80 : vector<1x256xf32>
      %82 = arith.addf %77, %81 : vector<1x256xf32>
      %83 = vector.extract_strided_slice %76 {offsets = [1, 0], sizes = [1, 256], strides = [1, 1]} : vector<9x256xf32> to vector<1x256xf32>
      %c16_i32_46 = arith.constant 16 : i32
      %84 = tpu.dynamic_rotate %83 by %c16_i32_46 dim 1 : vector<1x256xf32>, i32 -> vector<1x256xf32>
      %85 = vector.extract_strided_slice %29 {offsets = [1, 0], sizes = [1, 256], strides = [1, 1]} : vector<9x512xf32> to vector<1x256xf32>
      %86 = arith.mulf %84, %85 : vector<1x256xf32>
      %87 = arith.addf %82, %86 : vector<1x256xf32>
      %88 = vector.extract_strided_slice %76 {offsets = [2, 0], sizes = [1, 256], strides = [1, 1]} : vector<9x256xf32> to vector<1x256xf32>
      %c15_i32_47 = arith.constant 15 : i32
      %89 = tpu.dynamic_rotate %88 by %c15_i32_47 dim 1 : vector<1x256xf32>, i32 -> vector<1x256xf32>
      %90 = vector.extract_strided_slice %29 {offsets = [2, 0], sizes = [1, 256], strides = [1, 1]} : vector<9x512xf32> to vector<1x256xf32>
      %91 = arith.mulf %89, %90 : vector<1x256xf32>
      %92 = arith.addf %87, %91 : vector<1x256xf32>
      %93 = vector.extract_strided_slice %76 {offsets = [3, 0], sizes = [1, 256], strides = [1, 1]} : vector<9x256xf32> to vector<1x256xf32>
      %c1_i32_48 = arith.constant 1 : i32
      %94 = tpu.dynamic_rotate %93 by %c1_i32_48 dim 1 : vector<1x256xf32>, i32 -> vector<1x256xf32>
      %95 = vector.extract_strided_slice %29 {offsets = [3, 0], sizes = [1, 256], strides = [1, 1]} : vector<9x512xf32> to vector<1x256xf32>
      %96 = arith.mulf %94, %95 : vector<1x256xf32>
      %97 = arith.addf %92, %96 : vector<1x256xf32>
      %98 = vector.extract_strided_slice %76 {offsets = [4, 0], sizes = [1, 256], strides = [1, 1]} : vector<9x256xf32> to vector<1x256xf32>
      %99 = vector.extract_strided_slice %29 {offsets = [4, 0], sizes = [1, 256], strides = [1, 1]} : vector<9x512xf32> to vector<1x256xf32>
      %100 = arith.mulf %98, %99 : vector<1x256xf32>
      %101 = arith.addf %97, %100 : vector<1x256xf32>
      %102 = vector.extract_strided_slice %76 {offsets = [5, 0], sizes = [1, 256], strides = [1, 1]} : vector<9x256xf32> to vector<1x256xf32>
      %c255_i32 = arith.constant 255 : i32
      %103 = tpu.dynamic_rotate %102 by %c255_i32 dim 1 : vector<1x256xf32>, i32 -> vector<1x256xf32>
      %104 = vector.extract_strided_slice %29 {offsets = [5, 0], sizes = [1, 256], strides = [1, 1]} : vector<9x512xf32> to vector<1x256xf32>
      %105 = arith.mulf %103, %104 : vector<1x256xf32>
      %106 = arith.addf %101, %105 : vector<1x256xf32>
      %107 = vector.extract_strided_slice %76 {offsets = [6, 0], sizes = [1, 256], strides = [1, 1]} : vector<9x256xf32> to vector<1x256xf32>
      %c241_i32 = arith.constant 241 : i32
      %108 = tpu.dynamic_rotate %107 by %c241_i32 dim 1 : vector<1x256xf32>, i32 -> vector<1x256xf32>
      %109 = vector.extract_strided_slice %29 {offsets = [6, 0], sizes = [1, 256], strides = [1, 1]} : vector<9x512xf32> to vector<1x256xf32>
      %110 = arith.mulf %108, %109 : vector<1x256xf32>
      %111 = arith.addf %106, %110 : vector<1x256xf32>
      %112 = vector.extract_strided_slice %76 {offsets = [7, 0], sizes = [1, 256], strides = [1, 1]} : vector<9x256xf32> to vector<1x256xf32>
      %c240_i32 = arith.constant 240 : i32
      %113 = tpu.dynamic_rotate %112 by %c240_i32 dim 1 : vector<1x256xf32>, i32 -> vector<1x256xf32>
      %114 = vector.extract_strided_slice %29 {offsets = [7, 0], sizes = [1, 256], strides = [1, 1]} : vector<9x512xf32> to vector<1x256xf32>
      %115 = arith.mulf %113, %114 : vector<1x256xf32>
      %116 = arith.addf %111, %115 : vector<1x256xf32>
      %117 = vector.extract_strided_slice %76 {offsets = [8, 0], sizes = [1, 256], strides = [1, 1]} : vector<9x256xf32> to vector<1x256xf32>
      %c239_i32 = arith.constant 239 : i32
      %118 = tpu.dynamic_rotate %117 by %c239_i32 dim 1 : vector<1x256xf32>, i32 -> vector<1x256xf32>
      %119 = vector.extract_strided_slice %29 {offsets = [8, 0], sizes = [1, 256], strides = [1, 1]} : vector<9x512xf32> to vector<1x256xf32>
      %120 = arith.mulf %118, %119 : vector<1x256xf32>
      %121 = arith.addf %116, %120 : vector<1x256xf32>
      %c0_49 = arith.constant 0 : index
      %c0_50 = arith.constant 0 : index
      %122 = vector.load %arg5[%c0_49, %c0_50] : memref<1x1xf32, #tpu.memory_space<vmem>>, vector<1x1xf32>
      %cst_51 = arith.constant 2.000000e+00 : f32
      %123 = vector.broadcast %cst_51 : f32 to vector<1x1xf32>
      %124 = arith.mulf %123, %122 : vector<1x1xf32>
      %125 = vector.broadcast %124 : vector<1x1xf32> to vector<1x256xf32>
      %126 = arith.addf %121, %125 : vector<1x256xf32>
      %c0_52 = arith.constant 0 : index
      %c0_53 = arith.constant 0 : index
      %c0_54 = arith.constant 0 : index
      %127 = vector.load %arg7[%c0_52, %c0_53, %c0_54] : memref<1x1x256xf32, #tpu.memory_space<vmem>>, vector<1x1x256xf32>
      %128 = vector.shape_cast %127 : vector<1x1x256xf32> to vector<1x256xf32>
      %129 = vector.shape_cast %126 : vector<1x256xf32> to vector<1x1x256xf32>
      tpu.vector_store %arg7[%c0_52, %c0_53, %c0_54], %129 {strides = array<i32>} : memref<1x1x256xf32, #tpu.memory_space<vmem>>, vector<1x1x256xf32>,
    } else {
    }
    return
  }
  func.func @transform_0(%arg0: i32, %arg1: i32) -> (i32, i32, i32) {
    %c0_i32 = arith.constant 0 : i32
    %c0_i32_0 = arith.constant 0 : i32
    return %arg0, %arg1, %c0_i32 : i32, i32, i32
  }
  func.func @transform_1(%arg0: i32, %arg1: i32) -> (i32, i32) {
    %c0_i32 = arith.constant 0 : i32
    %c0_i32_0 = arith.constant 0 : i32
    %c0_i32_1 = arith.constant 0 : i32
    return %c0_i32, %c0_i32_0 : i32, i32
  }
  func.func @transform_2(%arg0: i32, %arg1: i32) -> (i32, i32) {
    %c0_i32 = arith.constant 0 : i32
    %c0_i32_0 = arith.constant 0 : i32
    %c0_i32_1 = arith.constant 0 : i32
    return %c0_i32, %c0_i32_0 : i32, i32
  }
  func.func @transform_3(%arg0: i32, %arg1: i32) -> (i32, i32) {
    %c0_i32 = arith.constant 0 : i32
    %c0_i32_0 = arith.constant 0 : i32
    %c0_i32_1 = arith.constant 0 : i32
    return %c0_i32, %c0_i32_0 : i32, i32
  }
  func.func @transform_4(%arg0: i32, %arg1: i32) -> (i32, i32) {
    %c0_i32 = arith.constant 0 : i32
    %c0_i32_0 = arith.constant 0 : i32
    %c0_i32_1 = arith.constant 0 : i32
    return %c0_i32, %c0_i32_0 : i32, i32
  }
  func.func @transform_5(%arg0: i32, %arg1: i32) -> (i32, i32, i32) {
    %c0_i32 = arith.constant 0 : i32
    %c0_i32_0 = arith.constant 0 : i32
    %c0_i32_1 = arith.constant 0 : i32
    return %arg0, %c0_i32, %c0_i32_0 : i32, i32, i32
  }
}

</mosaic_0001>

<llo_original>
// kernel: tpu_custom_call.1
$region0: #{tpu_custom_call.1}
  #allocation0 [shape = 'u32[]', space=smem, size = 0x4, offset = 0x4, fixed_abs, tag = 'smem constant byte address 0x4 - core index']
  #allocation1 [shape = 'u32[144,128]{1,0:T(1,128)}', space=vmem, size = 0x12000, scoped, tag = 'internal scratch']
  #allocation2 [shape = 'f32[1,256]{1,0:T(1,128)}', space=vmem, size = 0x400, scoped, tag = 'scratch operand']
  #allocation3 [shape = 'f32[1,256]{1,0:T(1,128)}', space=vmem, size = 0x400, scoped, tag = 'scratch operand']
  #allocation4 [shape = 'f32[10,512]{1,0:T(8,128)}', space=vmem, size = 0x8000, scoped, tag = 'scratch operand']
  #allocation5 [shape = 'f32[1,1]{1,0:T(1,128)S(1)}', space=vmem, size = 0x200, scoped, tag = 'scoped memory for tpu_custom_call.1']
  %s0 = inlined_call_operand.hbm [shape: f32[2,4,256], index: 0, kind: input, shape index: {}]
  %s1 = inlined_call_operand.hbm [shape: f32[16,10], index: 1, kind: input, shape index: {}]
  %s2 = inlined_call_operand.hbm [shape: f32[9,16], index: 2, kind: input, shape index: {}]
  %s3 = inlined_call_operand.<no memory space> [shape: f32[1,1], index: 3, kind: input, shape index: {}]
  %s4 = inlined_call_operand.hbm [shape: f32[9,512], index: 4, kind: input, shape index: {}]
  %s5 = inlined_call_operand.hbm [shape: f32[2,1,256], index: 5, kind: output, shape index: {}]
  %s6 = sld [smem:[#allocation0]]
  $region77: #{tpu_custom_call.1} parent=0
    _
  %s8 = ssub.s32 1, %s6
  %s9 = scalar_select 0, %s8, %s6
  %v10 = vstv %s3
  %11 = vst [vmem:[#allocation5] sm:$0x1] %v10
  $region1: #{tpu_custom_call.1} parent=0
    #allocation6 [shape = 'u8[8192]{0}', space=vmem, size = 0x2000, scoped, tag = 'input window, operand 0']
    #allocation7 [shape = 's32[2]{0}', space=sflag, size = 0x8, scoped, tag = 'scoped memory for tpu_custom_call.1']
    #allocation8 [shape = 's32[2]{0}', space=sflag, size = 0x8, scoped, tag = 'scoped memory for tpu_custom_call.1']
    #allocation9 [shape = 'u8[8192]{0}', space=vmem, size = 0x2000, scoped, tag = 'input window, operand 1, single buffered']
    #allocation10 [shape = 's32[1]{0}', space=sflag, size = 0x4, scoped, tag = 'scoped memory for tpu_custom_call.1']
    #allocation11 [shape = 'u8[8192]{0}', space=vmem, size = 0x2000, scoped, tag = 'input window, operand 2, single buffered']
    #allocation12 [shape = 'u8[32768]{0}', space=vmem, size = 0x8000, scoped, tag = 'input window, operand 4, single buffered']
    #allocation13 [shape = 's32[1]{0}', space=sflag, size = 0x4, scoped, tag = 'scoped memory for tpu_custom_call.1']
    #allocation14 [shape = 'u8[2048]{0}', space=vmem, size = 0x800, scoped, tag = 'output window, operand 0']
    %12 = vsyncpa [#allocation7], 0
    %s13 = scalar_lea.sflag [#allocation7], 1
    %14 = vsyncpa %s13, 0
    %15 = vsyncpa [#allocation10], 0
    %16 = vsyncpa [#allocation13], 0
    %17 = vsyncpa [#allocation8], 0
    %s18 = scalar_lea.sflag [#allocation8], 1
    %19 = vsyncpa %s18, 0
    loop: start=0, step=1, limit=4
    $region2: #{tpu_custom_call.1} parent=1 // loop_pre_header
      _
    $region3: #{tpu_custom_call.1} parent=1 // loop_header
      %s21 = sphi 0, %s25
      %p22 = scmp.ge.s32.totalorder %s21, 4
      %s28 = sphi 0, %s40
      %s29 = sphi 0, %s36
      %s30 = sphi 0, %s28
      %s31 = sphi 0, %s29
      %s32 = sphi 0, %s30
      %s33 = sphi 0, %s31
      %s45 = sphi 0, %s47
      %s48 = sphi 0, %s45
      %s49 = sphi 0, %s48
      %s65 = sphi 0, %s49
      %s69 = sphi 0, %s69
      %s71 = sphi 0, %s69
      %s72 = sphi 0, %s71
      %s86 = sphi 0, %s72
      %s90 = sphi 0, %s90
      %s92 = sphi 0, %s90
      %s93 = sphi 0, %s92
      %s107 = sphi 0, %s93
      %s111 = sphi 0, %s111
      %s113 = sphi 0, %s111
      %s114 = sphi 0, %s113
      %s128 = sphi 0, %s114
      %s132 = sphi 0, %s132
      %s134 = sphi 0, %s132
      %s135 = sphi 0, %s134
      %s149 = sphi 0, %s135
      %s155 = sphi 0, %s157
      %s158 = sphi 0, %s155
      %s159 = sphi 0, %s158
      %s175 = sphi 0, %s159
    $region4: #{tpu_custom_call.1} parent=1 // loop_header_branch
      %24 = sbr.rel (%p22) target = $region8
    $region5: #{tpu_custom_call.1} parent=1 // loop_body
      %s26 = ssub.s32 %s21, 1
      %s27 = ssub.s32 %s21, 2
      %s34 = sadd.s32 1, %s29
      %p35 = scmp.ge.s32.totalorder %s34, 1
      %s36 = scalar_select %p35, 0, %s34
      %s37 = sadd.s32 1, %s28
      %s38 = scalar_select %p35, %s37, %s28
      %p39 = scmp.ge.s32.totalorder %s38, 2
      %s40 = scalar_select %p39, 0, %s38
      %s41 = ssub.s32 %s28, %s40
      %s42 = ssub.s32 %s29, %s36
      %s43 = sor.u32 %s41, %s42
      %p44 = scmp.eq.s32.totalorder %s43, 0
      %s46 = sadd.s32 %s45, 1
      %s47 = scalar_select %p44, %s45, %s46
      %p50 = pneg %p44
      %p51 = scmp.eq.s32.totalorder %s21, 1
      %p52 = por %p50, %p51
      %p53 = scmp.ne.s32.totalorder %s45, %s48
      %p54 = scmp.eq.s32.totalorder %s21, 0
      %p55 = por %p53, %p54
      %p56 = scmp.ne.s32.totalorder %s45, %s48
      %p57 = scmp.eq.s32.totalorder %s26, 1
      %p58 = por %p56, %p57
      %p59 = scmp.ne.s32.totalorder %s48, %s49
      %p60 = scmp.eq.s32.totalorder %s26, 0
      %p61 = por %p59, %p60
      %p62 = scmp.ne.s32.totalorder %s48, %s49
      %p63 = scmp.eq.s32.totalorder %s27, 1
      %p64 = por %p62, %p63
      %p66 = scmp.ne.s32.totalorder %s49, %s65
      %p67 = scmp.eq.s32.totalorder %s27, 0
      %p68 = por %p66, %p67
      %s70 = sadd.s32 %s69, 1
      %p73 = scmp.eq.s32.totalorder %s21, 1
      %p74 = scmp.ne.s32.totalorder %s69, %s71
      %p75 = scmp.eq.s32.totalorder %s21, 0
      %p76 = por %p74, %p75
      %p77 = scmp.ne.s32.totalorder %s69, %s71
      %p78 = scmp.eq.s32.totalorder %s26, 1
      %p79 = por %p77, %p78
      %p80 = scmp.ne.s32.totalorder %s71, %s72
      %p81 = scmp.eq.s32.totalorder %s26, 0
      %p82 = por %p80, %p81
      %p83 = scmp.ne.s32.totalorder %s71, %s72
      %p84 = scmp.eq.s32.totalorder %s27, 1
      %p85 = por %p83, %p84
      %p87 = scmp.ne.s32.totalorder %s72, %s86
      %p88 = scmp.eq.s32.totalorder %s27, 0
      %p89 = por %p87, %p88
      %s91 = sadd.s32 %s90, 1
      %p94 = scmp.eq.s32.totalorder %s21, 1
      %p95 = scmp.ne.s32.totalorder %s90, %s92
      %p96 = scmp.eq.s32.totalorder %s21, 0
      %p97 = por %p95, %p96
      %p98 = scmp.ne.s32.totalorder %s90, %s92
      %p99 = scmp.eq.s32.totalorder %s26, 1
      %p100 = por %p98, %p99
      %p101 = scmp.ne.s32.totalorder %s92, %s93
      %p102 = scmp.eq.s32.totalorder %s26, 0
      %p103 = por %p101, %p102
      %p104 = scmp.ne.s32.totalorder %s92, %s93
      %p105 = scmp.eq.s32.totalorder %s27, 1
      %p106 = por %p104, %p105
      %p108 = scmp.ne.s32.totalorder %s93, %s107
      %p109 = scmp.eq.s32.totalorder %s27, 0
      %p110 = por %p108, %p109
      %s112 = sadd.s32 %s111, 1
      %p115 = scmp.eq.s32.totalorder %s21, 1
      %p116 = scmp.ne.s32.totalorder %s111, %s113
      %p117 = scmp.eq.s32.totalorder %s21, 0
      %p118 = por %p116, %p117
      %p119 = scmp.ne.s32.totalorder %s111, %s113
      %p120 = scmp.eq.s32.totalorder %s26, 1
      %p121 = por %p119, %p120
      %p122 = scmp.ne.s32.totalorder %s113, %s114
      %p123 = scmp.eq.s32.totalorder %s26, 0
      %p124 = por %p122, %p123
      %p125 = scmp.ne.s32.totalorder %s113, %s114
      %p126 = scmp.eq.s32.totalorder %s27, 1
      %p127 = por %p125, %p126
      %p129 = scmp.ne.s32.totalorder %s114, %s128
      %p130 = scmp.eq.s32.totalorder %s27, 0
      %p131 = por %p129, %p130
      %s133 = sadd.s32 %s132, 1
      %p136 = scmp.eq.s32.totalorder %s21, 1
      %p137 = scmp.ne.s32.totalorder %s132, %s134
      %p138 = scmp.eq.s32.totalorder %s21, 0
      %p139 = por %p137, %p138
      %p140 = scmp.ne.s32.totalorder %s132, %s134
      %p141 = scmp.eq.s32.totalorder %s26, 1
      %p142 = por %p140, %p141
      %p143 = scmp.ne.s32.totalorder %s134, %s135
      %p144 = scmp.eq.s32.totalorder %s26, 0
      %p145 = por %p143, %p144
      %p146 = scmp.ne.s32.totalorder %s134, %s135
      %p147 = scmp.eq.s32.totalorder %s27, 1
      %p148 = por %p146, %p147
      %p150 = scmp.ne.s32.totalorder %s135, %s149
      %p151 = scmp.eq.s32.totalorder %s27, 0
      %p152 = por %p150, %p151
      %s153 = ssub.s32 %s28, %s40
      %p154 = scmp.eq.s32.totalorder %s153, 0
      %s156 = sadd.s32 %s155, 1
      %s157 = scalar_select %p154, %s155, %s156
      %p160 = pneg %p154
      %p161 = scmp.eq.s32.totalorder %s21, 1
      %p162 = por %p160, %p161
      %p163 = scmp.ne.s32.totalorder %s155, %s158
      %p164 = scmp.eq.s32.totalorder %s21, 0
      %p165 = por %p163, %p164
      %p166 = scmp.ne.s32.totalorder %s155, %s158
      %p167 = scmp.eq.s32.totalorder %s26, 1
      %p168 = por %p166, %p167
      %p169 = scmp.ne.s32.totalorder %s158, %s159
      %p170 = scmp.eq.s32.totalorder %s26, 0
      %p171 = por %p169, %p170
      %p172 = scmp.ne.s32.totalorder %s158, %s159
      %p173 = scmp.eq.s32.totalorder %s27, 1
      %p174 = por %p172, %p173
      %p176 = scmp.ne.s32.totalorder %s159, %s175
      %p177 = scmp.eq.s32.totalorder %s27, 0
      %p178 = por %p176, %p177
      %p179 = scmp.le.s32.totalorder 1, %s21
      %p180 = scmp.lt.s32.totalorder %s21, 3
      %p181 = pnand %p179, %p180
      %p182 = pneg %p181
      // Predicated region
      $region9: #{tpu_custom_call.1} parent=5 // pred_check
        _
      $region10: #{tpu_custom_call.1} parent=5 // pred_check_branch
        %184 = sbr.rel (%p181) target = $region12
      $region11: #{tpu_custom_call.1} parent=5 // pred_region
        %s185 = ssub.s32 %s21, 1
        // Predicated region
        $region13: #{tpu_custom_call.1} parent=11 // pred_check
          %p186 = pneg %p82
        $region14: #{tpu_custom_call.1} parent=11 // pred_check_branch
          %188 = sbr.rel (%p186) target = $region16
        $region15: #{tpu_custom_call.1} parent=11 // pred_region
          %s190 = ssub.s32 256, 256
          %191 = vsyncadd [#allocation10], %s190
          %s192 = sshll.u32 [#allocation9], 4
          %s193 = int_to_ptr.vmem [resolvable:$true] %s192
          %198 = dma.hbm_to_vmem [thread:$0]  %s1, 256, %s193, [#allocation10], 128, 128, 8
        $region16: #{tpu_custom_call.1} parent=11 // pred_fallthru
          _
        // Predicated region
        $region17: #{tpu_custom_call.1} parent=11 // pred_check
          %p199 = pneg %p103
        $region18: #{tpu_custom_call.1} parent=11 // pred_check_branch
          %201 = sbr.rel (%p199) target = $region20
        $region19: #{tpu_custom_call.1} parent=11 // pred_region
          %s203 = ssub.s32 256, 256
          %204 = vsyncadd [#allocation10], %s203
          %s205 = sshll.u32 [#allocation11], 4
          %s206 = int_to_ptr.vmem [resolvable:$true] %s205
          %211 = dma.hbm_to_vmem [thread:$0]  %s2, 256, %s206, [#allocation10], 128, 128, 8
        $region20: #{tpu_custom_call.1} parent=11 // pred_fallthru
          _
        // Predicated region
        $region21: #{tpu_custom_call.1} parent=11 // pred_check
          %p212 = pneg %p124
        $region22: #{tpu_custom_call.1} parent=11 // pred_check_branch
          %214 = sbr.rel (%p212) target = $region24
        $region23: #{tpu_custom_call.1} parent=11 // pred_region
          _
        $region24: #{tpu_custom_call.1} parent=11 // pred_fallthru
          _
        // Predicated region
        $region25: #{tpu_custom_call.1} parent=11 // pred_check
          %p215 = pneg %p145
        $region26: #{tpu_custom_call.1} parent=11 // pred_check_branch
          %217 = sbr.rel (%p215) target = $region28
        $region27: #{tpu_custom_call.1} parent=11 // pred_region
          %s219 = ssub.s32 1024, 1024
          %220 = vsyncadd [#allocation13], %s219
          %s221 = sshll.u32 [#allocation12], 4
          %s222 = int_to_ptr.vmem [resolvable:$true] %s221
          %227 = dma.hbm_to_vmem [thread:$0]  %s4, 1024, %s222, [#allocation13], 512, 512, 32
        $region28: #{tpu_custom_call.1} parent=11 // pred_fallthru
          _
      $region12: #{tpu_custom_call.1} parent=5 // pred_fallthru
        _
      %p228 = scmp.lt.s32.totalorder %s21, 2
      // Predicated region
      $region29: #{tpu_custom_call.1} parent=5 // pred_check
        %p229 = pneg %p228
      $region30: #{tpu_custom_call.1} parent=5 // pred_check_branch
        %231 = sbr.rel (%p229) target = $region32
      $region31: #{tpu_custom_call.1} parent=5 // pred_region
        // Predicated region
        $region33: #{tpu_custom_call.1} parent=31 // pred_check
          %p232 = pneg %p55
        $region34: #{tpu_custom_call.1} parent=31 // pred_check_branch
          %234 = sbr.rel (%p232) target = $region36
        $region35: #{tpu_custom_call.1} parent=31 // pred_region
          %s235 = sand.u32 %s45, 1
          %s236 = scalar_lea.sflag [#allocation7], %s235
          %s237 = sand.u32 %s45, 1
          %s238 = smul.addr %s237, 8
          %s239 = scalar_lea.vmem [#allocation6], %s238
          %s241 = ssub.s32 128, 128
          %242 = vsyncadd %s236, %s241
          %s243 = smul.addr %s29, 2
          %s244 = smul.addr %s28, 2
          %s245 = sadd.s32 %s243, %s244
          %s246 = smul.addr %s245, 64
          %s247 = scalar_lea.hbm %s0, %s246
          %s249 = sshll.u32 %s239, 4
          %s250 = int_to_ptr.vmem [resolvable:$true] %s249
          %252 = dma.hbm_to_vmem [thread:$0]  %s247, 128, %s250, %s236
        $region36: #{tpu_custom_call.1} parent=31 // pred_fallthru
          _
      $region32: #{tpu_custom_call.1} parent=5 // pred_fallthru
        _
      %p253 = scmp.le.s32.totalorder 1, %s21
      %p254 = scmp.lt.s32.totalorder %s21, 3
      %p255 = pnand %p253, %p254
      %p256 = pneg %p255
      // Predicated region
      $region37: #{tpu_custom_call.1} parent=5 // pred_check
        _
      $region38: #{tpu_custom_call.1} parent=5 // pred_check_branch
        %258 = sbr.rel (%p255) target = $region40
      $region39: #{tpu_custom_call.1} parent=5 // pred_region
        %s259 = ssub.s32 %s21, 1
        %s260 = sand.u32 %s48, 1
        %s261 = scalar_lea.sflag [#allocation7], %s260
        %s262 = sand.u32 %s48, 1
        %s263 = smul.addr %s262, 8
        %s264 = scalar_lea.vmem [#allocation6], %s263
        // Predicated region
        $region41: #{tpu_custom_call.1} parent=39 // pred_check
          %p265 = pneg %p61
        $region42: #{tpu_custom_call.1} parent=39 // pred_check_branch
          %267 = sbr.rel (%p265) target = $region44
        $region43: #{tpu_custom_call.1} parent=39 // pred_region
          %268 = dma.done %s261, 128
        $region44: #{tpu_custom_call.1} parent=39 // pred_fallthru
          _
        // Predicated region
        $region45: #{tpu_custom_call.1} parent=39 // pred_check
          %p269 = pneg %p82
        $region46: #{tpu_custom_call.1} parent=39 // pred_check_branch
          %271 = sbr.rel (%p269) target = $region48
        $region47: #{tpu_custom_call.1} parent=39 // pred_region
          %272 = dma.done [#allocation10], 256
        $region48: #{tpu_custom_call.1} parent=39 // pred_fallthru
          _
        // Predicated region
        $region49: #{tpu_custom_call.1} parent=39 // pred_check
          %p273 = pneg %p103
        $region50: #{tpu_custom_call.1} parent=39 // pred_check_branch
          %275 = sbr.rel (%p273) target = $region52
        $region51: #{tpu_custom_call.1} parent=39 // pred_region
          %276 = dma.done [#allocation10], 256
        $region52: #{tpu_custom_call.1} parent=39 // pred_fallthru
          _
        // Predicated region
        $region53: #{tpu_custom_call.1} parent=39 // pred_check
          %p277 = pneg %p145
        $region54: #{tpu_custom_call.1} parent=39 // pred_check_branch
          %279 = sbr.rel (%p277) target = $region56
        $region55: #{tpu_custom_call.1} parent=39 // pred_region
          %280 = dma.done [#allocation13], 1024
        $region56: #{tpu_custom_call.1} parent=39 // pred_fallthru
          _
        %s281 = sand.u32 %s48, 1
        %s282 = scalar_lea.sflag [#allocation7], %s281
        %s283 = sand.u32 %s48, 1
        %s284 = smul.addr %s283, 8
        %s285 = scalar_lea.vmem [#allocation6], %s284
        %p286 = pneg %p61
        %p287 = pneg %p58
        %p288 = pneg %p82
        %p289 = pneg %p79
        %p290 = pneg %p103
        %p291 = pneg %p100
        %p292 = pneg %p124
        %p293 = pneg %p121
        %p294 = pneg %p145
        %p295 = pneg %p142
        %p296 = pneg %p171
        %p297 = pneg %p168
        %s298 = sand.u32 %s158, 1
        %s299 = scalar_lea.sflag [#allocation8], %s298
        %s300 = sand.u32 %s158, 1
        %s301 = smul.addr %s300, 2
        %s302 = scalar_lea.vmem [#allocation14], %s301
        %v303 = vld [vmem:[%s264] sm:$0xff]
        %p304 = scmp.eq.s32.totalorder %s31, 0
        // Predicated region
        $region57: #{tpu_custom_call.1} parent=39 // pred_check
          %p305 = pneg %p304
        $region58: #{tpu_custom_call.1} parent=39 // pred_check_branch
          %307 = sbr.rel (%p305) target = $region60
        $region59: #{tpu_custom_call.1} parent=39 // pred_region
          %v308 = vlaneseq
          %vm309 = vcmp.ge.s32.totalorder %v308, 0
          %vm310 = vcmp.lt.s32.totalorder %v308, 256
          %vm311 = vmand %vm309, %vm310
          %312 = vst.msk [vmem:[#allocation2] sm:$0x3] %vm311, 0.0
          %313 = vst.msk [vmem:[#allocation3] sm:$0x3] %vm311, -inf
        $region60: #{tpu_custom_call.1} parent=39 // pred_fallthru
          _
        %v314 = vlaneseq
        %v315 = vand.u32 %v314, 127
        %s316 = smul.u32 %s31, 4
        %v317 = vstv %s316
        %v318 = vadd.s32 %v315, %v317
        %vm319 = vcmp.lt.s32.totalorder %v318, 4
        %v320 = vsel %vm319, 0.25, 0.0
        %v321 = vld [vmem:[#allocation2] sm:$0x3]
        %v323 = vcombine.high %v303, %v303
        %vm324 = vcmask 31744
        %v326 = vsel %vm324, %v320, 0
        %vm328 = vcmask 1043456
        %v329 = vsel %vm328, %v303, 0
        %v331 = vsel %vm328, %v323, 0
        %333 = vmatprep.subr.mxu0 %v331
        %334 = vmatpush1.msra.mxu0 %v329
        %335 = vmatprep.subr.mxu0 0.0
        %336 = vmatpush1.msra.mxu0 0.0
        %337 = vmatprep.subr.mxu0 0.0
        %338 = vmatpush1.msra.mxu0 0.0
        %339 = vmatprep.subr.mxu0 0.0
        %340 = vmatpush1.msra.mxu0 0.0
        %341 = vmatprep.subr.mxu0 0.0
        %342 = vmatpush1.msra.mxu0 0.0
        %343 = vmatprep.subr.mxu0 0.0
        %344 = vmatpush1.msra.mxu0 0.0
        %345 = vmatprep.subr.mxu0 0.0
        %346 = vmatpush1.msra.mxu0 0.0
        %347 = vmatprep.subr.mxu0 0.0
        %348 = vmatpush1.msra.mxu0 0.0
        %349 = vmatprep.subr.mxu0 0.0
        %350 = vmatpush1.msra.mxu0 0.0
        %351 = vmatprep.subr.mxu0 0.0
        %352 = vmatpush1.msra.mxu0 0.0
        %353 = vmatprep.subr.mxu0 0.0
        %354 = vmatpush1.msra.mxu0 0.0
        %355 = vmatprep.subr.mxu0 0.0
        %356 = vmatpush1.msra.mxu0 0.0
        %357 = vmatprep.subr.mxu0 0.0
        %358 = vmatpush1.msra.mxu0 0.0
        %359 = vmatprep.subr.mxu0 0.0
        %360 = vmatpush1.msra.mxu0 0.0
        %361 = vmatprep.subr.mxu0 0.0
        %362 = vmatpush1.msra.mxu0 0.0
        %363 = vmatprep.subr.mxu0 0.0
        %364 = vmatpush1.msra.mxu0 0.0
        %365 = vmatprep.subr.mxu0 0.0
        %366 = vmatpush1.msra.mxu0 0.0
        %367 = vmatprep.subr.mxu0 0.0
        %368 = vmatpush1.msra.mxu0 0.0
        %369 = vmatprep.subr.mxu0 0.0
        %370 = vmatpush1.msra.mxu0 0.0
        %371 = vmatprep.subr.mxu0 0.0
        %372 = vmatpush1.msra.mxu0 0.0
        %373 = vmatprep.subr.mxu0 0.0
        %374 = vmatpush1.msra.mxu0 0.0
        %375 = vmatprep.subr.mxu0 0.0
        %376 = vmatpush1.msra.mxu0 0.0
        %377 = vmatprep.subr.mxu0 0.0
        %378 = vmatpush1.msra.mxu0 0.0
        %379 = vmatprep.subr.mxu0 0.0
        %380 = vmatpush1.msra.mxu0 0.0
        %381 = vmatprep.subr.mxu0 0.0
        %382 = vmatpush1.msra.mxu0 0.0
        %383 = vmatprep.subr.mxu0 0.0
        %384 = vmatpush1.msra.mxu0 0.0
        %385 = vmatprep.subr.mxu0 0.0
        %386 = vmatpush1.msra.mxu0 0.0
        %387 = vmatprep.subr.mxu0 0.0
        %388 = vmatpush1.msra.mxu0 0.0
        %389 = vmatprep.subr.mxu0 0.0
        %390 = vmatpush1.msra.mxu0 0.0
        %391 = vmatprep.subr.mxu0 0.0
        %392 = vmatpush1.msra.mxu0 0.0
        %393 = vmatprep.subr.mxu0 0.0
        %394 = vmatpush1.msra.mxu0 0.0
        %395 = vmatprep.subr.mxu0 0.0
        %396 = vmatpush1.msra.mxu0 0.0
        %397 = vmatprep.mubr.f32.mxu0 0.0
        %398 = vmatmul.mubr.f32.gmra.mrb[0].mxu0 %v326
        %v399 = vpop.f32.mrb[0].mxu0
        %v400 = vadd.f32 0.0, %v399
        %v401 = vpop.f32.mrb[0].mxu0
        %v402 = vadd.f32 0.0, %v401
        %403 = vdwg.mxu0
        %v406 = vcombine.low %v400, %v402
        %v408 = vunpack.c.l.s4 1966171168
        %v409 = vunpack.c.0.s8 %v408
        %v410 = vlaneseq
        %v411 = vshrl.u32 %v410, 7
        %v412 = vsub.s32 %v409, %v411
        %v413 = vrot.slane %v406, %v412
        %v415 = vunpack.c.l.s4 1966171168
        %v416 = vunpack.c.0.s8 %v415
        %v417 = vlaneseq
        %v418 = vshrl.u32 %v417, 7
        %v419 = vsub.s32 %v416, %v418
        %v420 = vrot.slane %v413, %v419
        %v422 = vadd.f32 %v321, %v420
        %v423 = vlaneseq
        %vm424 = vcmp.ge.s32.totalorder %v423, 0
        %vm425 = vcmp.lt.s32.totalorder %v423, 256
        %vm426 = vmand %vm424, %vm425
        %427 = vst.msk [vmem:[#allocation2] sm:$0x3] %vm426, %v422
        %v428 = vld [vmem:[#allocation3] sm:$0x3]
        %v430 = vsel %vm328, %v303, -inf
        %v431 = vrot.slane %v430, 4
        %v432 = vmax.f32 %v430, %v431
        %v433 = vrot.slane %v432, 2
        %v434 = vmax.f32 %v432, %v433
        %v435 = vrot.slane %v434, 1
        %v436 = vmax.f32 %v434, %v435
        %v437 = vsel %vm328, %v323, -inf
        %v438 = vrot.slane %v437, 4
        %v439 = vmax.f32 %v437, %v438
        %v440 = vrot.slane %v439, 2
        %v441 = vmax.f32 %v439, %v440
        %v442 = vrot.slane %v441, 1
        %v443 = vmax.f32 %v441, %v442
        %v446 = vcombine.low %v436, %v443
        %v448 = vunpack.c.l.s4 1966171168
        %v449 = vunpack.c.0.s8 %v448
        %v450 = vlaneseq
        %v451 = vshrl.u32 %v450, 7
        %v452 = vsub.s32 %v449, %v451
        %v453 = vrot.slane %v446, %v452
        %v455 = vunpack.c.l.s4 1966171168
        %v456 = vunpack.c.0.s8 %v455
        %v457 = vlaneseq
        %v458 = vshrl.u32 %v457, 7
        %v459 = vsub.s32 %v456, %v458
        %v460 = vrot.slane %v453, %v459
        %v462 = vmax.f32 %v428, %v460
        %463 = vst.msk [vmem:[#allocation3] sm:$0x3] %vm426, %v462
        // Predicated region
        $region61: #{tpu_custom_call.1} parent=39 // pred_check
          %p464 = pneg %p304
        $region62: #{tpu_custom_call.1} parent=39 // pred_check_branch
          %466 = sbr.rel (%p464) target = $region64
        $region63: #{tpu_custom_call.1} parent=39 // pred_region
          %v467 = vld [vmem:[#allocation2] sm:$0x3]
          %v468 = vld [vmem:[#allocation3] sm:$0x3]
          %v470 = vlaneseq
          %v471 = vshrl.u32 %v470, 7
          %v472 = vsub.s32 0, %v471
          %v473 = vrot.slane %v467, %v472
          %v474 = vlaneseq
          %v475 = vshrl.u32 %v474, 7
          %v476 = vsub.s32 1, %v475
          %v477 = vrot.slane %v467, %v476
          %v481 = vlaneseq
          %v482 = vshrl.u32 %v481, 7
          %v483 = vsub.s32 0, %v482
          %v484 = vrot.slane %v468, %v483
          %v485 = vlaneseq
          %v486 = vshrl.u32 %v485, 7
          %v487 = vsub.s32 1, %v486
          %v488 = vrot.slane %v468, %v487
          %v491 = vld [vmem:[#allocation12] sm:$0xff]
          %v492 = vld [vmem:[#allocation12 + $0x8] sm:$0xff]
          %v493 = vld [vmem:[#allocation12 + $0x10] sm:$0xff]
          %v494 = vld [vmem:[#allocation12 + $0x18] sm:$0xff]
          %v495 = vld [vmem:[#allocation12 + $0x20] sm:$0x1]
          %v496 = vld [vmem:[#allocation12 + $0x28] sm:$0x1]
          %v497 = vld [vmem:[#allocation12 + $0x30] sm:$0x1]
          %v498 = vld [vmem:[#allocation12 + $0x38] sm:$0x1]
          %499 = vrot.lane.b32.xlu0 %v473, 17
          %v500 = vpop.permute.xlu0 %499
          %501 = vrot.lane.b32.xlu0 %v477, 17
          %v502 = vpop.permute.xlu0 %501
          %503 = vrot.lane.b32.xlu0 %v484, 17
          %v504 = vpop.permute.xlu0 %503
          %505 = vrot.lane.b32.xlu0 %v488, 17
          %v506 = vpop.permute.xlu0 %505
          %vm507 = vcmp.lt.s32.totalorder %v315, 17
          %v508 = vsel %vm507, %v504, %v506
          %v509 = vsel %vm507, %v502, %v504
          %v510 = vsel %vm507, %v500, %v502
          %v511 = vsel %vm507, %v506, %v500
          %v512 = vmul.f32 %v511, %v491
          %v513 = vmul.f32 %v510, %v492
          %v514 = vmul.f32 %v509, %v493
          %v515 = vmul.f32 %v508, %v494
          %v520 = vcombine.low %v512, %v513
          %v521 = vcombine.low %v514, %v515
          %v523 = vunpack.c.l.s4 1966171168
          %v524 = vunpack.c.0.s8 %v523
          %v525 = vlaneseq
          %v526 = vshrl.u32 %v525, 7
          %v527 = vsub.s32 %v524, %v526
          %v528 = vrot.slane %v520, %v527
          %v530 = vunpack.c.l.s4 1966171168
          %v531 = vunpack.c.0.s8 %v530
          %v532 = vlaneseq
          %v533 = vshrl.u32 %v532, 7
          %v534 = vsub.s32 %v531, %v533
          %v535 = vrot.slane %v521, %v534
          %v536 = vcombine.low %v528, %v535
          %v538 = vunpack.c.l.s4 1966171168
          %v539 = vunpack.c.0.s8 %v538
          %v540 = vlaneseq
          %v541 = vshrl.u32 %v540, 7
          %v542 = vsub.s32 %v539, %v541
          %v543 = vrot.slane %v536, %v542
          %vm545 = vcmp.lt.s32.totalorder %v423, 512
          %vm546 = vmand %vm424, %vm545
          %547 = vst.msk [vmem:[#allocation4] ss:$8 sm:$0xf] %vm546, %v543
          %548 = vst.msk [vmem:[#allocation4] ss:$8 sm:$0x0] %vm546, %v543
          %549 = vrot.lane.b32.xlu0 %v473, 16
          %v550 = vpop.permute.xlu0 %549
          %551 = vrot.lane.b32.xlu0 %v477, 16
          %v552 = vpop.permute.xlu0 %551
          %553 = vrot.lane.b32.xlu0 %v484, 16
          %v554 = vpop.permute.xlu0 %553
          %555 = vrot.lane.b32.xlu0 %v488, 16
          %v556 = vpop.permute.xlu0 %555
          %vm557 = vcmp.lt.s32.totalorder %v315, 16
          %v558 = vsel %vm557, %v554, %v556
          %v559 = vsel %vm557, %v552, %v554
          %v560 = vsel %vm557, %v550, %v552
          %v561 = vsel %vm557, %v556, %v550
          %v566 = vrot.slane %v491, 1
          %v567 = vrot.slane %v492, 1
          %v568 = vrot.slane %v493, 1
          %v569 = vrot.slane %v494, 1
          %v574 = vmul.f32 %v561, %v566
          %v575 = vmul.f32 %v560, %v567
          %v576 = vmul.f32 %v559, %v568
          %v577 = vmul.f32 %v558, %v569
          %v582 = vcombine.low %v574, %v575
          %v583 = vcombine.low %v576, %v577
          %v585 = vunpack.c.l.s4 1966171168
          %v586 = vunpack.c.0.s8 %v585
          %v587 = vlaneseq
          %v588 = vshrl.u32 %v587, 7
          %v589 = vsub.s32 %v586, %v588
          %v590 = vrot.slane %v582, %v589
          %v592 = vunpack.c.l.s4 1966171168
          %v593 = vunpack.c.0.s8 %v592
          %v594 = vlaneseq
          %v595 = vshrl.u32 %v594, 7
          %v596 = vsub.s32 %v593, %v595
          %v597 = vrot.slane %v583, %v596
          %v598 = vcombine.low %v590, %v597
          %v600 = vunpack.c.l.s4 1966171168
          %v601 = vunpack.c.0.s8 %v600
          %v602 = vlaneseq
          %v603 = vshrl.u32 %v602, 7
          %v604 = vsub.s32 %v601, %v603
          %v605 = vrot.slane %v598, %v604
          %s607 = scalar_lea.vmem [#allocation4], 1
          %608 = vst.msk [vmem:[%s607] ss:$8 sm:$0xf] %vm546, %v605
          %609 = vst.msk [vmem:[%s607] ss:$8 sm:$0x0] %vm546, %v605
          %610 = vrot.lane.b32.xlu0 %v473, 15
          %v611 = vpop.permute.xlu0 %610
          %612 = vrot.lane.b32.xlu0 %v477, 15
          %v613 = vpop.permute.xlu0 %612
          %614 = vrot.lane.b32.xlu0 %v484, 15
          %v615 = vpop.permute.xlu0 %614
          %616 = vrot.lane.b32.xlu0 %v488, 15
          %v617 = vpop.permute.xlu0 %616
          %vm618 = vcmp.lt.s32.totalorder %v315, 15
          %v619 = vsel %vm618, %v615, %v617
          %v620 = vsel %vm618, %v613, %v615
          %v621 = vsel %vm618, %v611, %v613
          %v622 = vsel %vm618, %v617, %v611
          %v623 = vrot.slane %v491, 2
          %v624 = vrot.slane %v492, 2
          %v625 = vrot.slane %v493, 2
          %v626 = vrot.slane %v494, 2
          %v631 = vmul.f32 %v622, %v623
          %v632 = vmul.f32 %v621, %v624
          %v633 = vmul.f32 %v620, %v625
          %v634 = vmul.f32 %v619, %v626
          %v639 = vcombine.low %v631, %v632
          %v640 = vcombine.low %v633, %v634
          %v642 = vunpack.c.l.s4 1966171168
          %v643 = vunpack.c.0.s8 %v642
          %v644 = vlaneseq
          %v645 = vshrl.u32 %v644, 7
          %v646 = vsub.s32 %v643, %v645
          %v647 = vrot.slane %v639, %v646
          %v649 = vunpack.c.l.s4 1966171168
          %v650 = vunpack.c.0.s8 %v649
          %v651 = vlaneseq
          %v652 = vshrl.u32 %v651, 7
          %v653 = vsub.s32 %v650, %v652
          %v654 = vrot.slane %v640, %v653
          %v655 = vcombine.low %v647, %v654
          %v657 = vunpack.c.l.s4 1966171168
          %v658 = vunpack.c.0.s8 %v657
          %v659 = vlaneseq
          %v660 = vshrl.u32 %v659, 7
          %v661 = vsub.s32 %v658, %v660
          %v662 = vrot.slane %v655, %v661
          %s664 = scalar_lea.vmem [#allocation4], 2
          %665 = vst.msk [vmem:[%s664] ss:$8 sm:$0xf] %vm546, %v662
          %666 = vst.msk [vmem:[%s664] ss:$8 sm:$0x0] %vm546, %v662
          %667 = vrot.lane.b32.xlu0 %v473, 1
          %v668 = vpop.permute.xlu0 %667
          %669 = vrot.lane.b32.xlu0 %v477, 1
          %v670 = vpop.permute.xlu0 %669
          %671 = vrot.lane.b32.xlu0 %v484, 1
          %v672 = vpop.permute.xlu0 %671
          %673 = vrot.lane.b32.xlu0 %v488, 1
          %v674 = vpop.permute.xlu0 %673
          %vm675 = vcmp.lt.s32.totalorder %v315, 1
          %v676 = vsel %vm675, %v672, %v674
          %v677 = vsel %vm675, %v670, %v672
          %v678 = vsel %vm675, %v668, %v670
          %v679 = vsel %vm675, %v674, %v668
          %v680 = vrot.slane %v491, 3
          %v681 = vrot.slane %v492, 3
          %v682 = vrot.slane %v493, 3
          %v683 = vrot.slane %v494, 3
          %v688 = vmul.f32 %v679, %v680
          %v689 = vmul.f32 %v678, %v681
          %v690 = vmul.f32 %v677, %v682
          %v691 = vmul.f32 %v676, %v683
          %v696 = vcombine.low %v688, %v689
          %v697 = vcombine.low %v690, %v691
          %v699 = vunpack.c.l.s4 1966171168
          %v700 = vunpack.c.0.s8 %v699
          %v701 = vlaneseq
          %v702 = vshrl.u32 %v701, 7
          %v703 = vsub.s32 %v700, %v702
          %v704 = vrot.slane %v696, %v703
          %v706 = vunpack.c.l.s4 1966171168
          %v707 = vunpack.c.0.s8 %v706
          %v708 = vlaneseq
          %v709 = vshrl.u32 %v708, 7
          %v710 = vsub.s32 %v707, %v709
          %v711 = vrot.slane %v697, %v710
          %v712 = vcombine.low %v704, %v711
          %v714 = vunpack.c.l.s4 1966171168
          %v715 = vunpack.c.0.s8 %v714
          %v716 = vlaneseq
          %v717 = vshrl.u32 %v716, 7
          %v718 = vsub.s32 %v715, %v717
          %v719 = vrot.slane %v712, %v718
          %s721 = scalar_lea.vmem [#allocation4], 3
          %722 = vst.msk [vmem:[%s721] ss:$8 sm:$0xf] %vm546, %v719
          %723 = vst.msk [vmem:[%s721] ss:$8 sm:$0x0] %vm546, %v719
          %v724 = vrot.slane %v491, 4
          %v725 = vrot.slane %v492, 4
          %v726 = vrot.slane %v493, 4
          %v727 = vrot.slane %v494, 4
          %v732 = vmul.f32 %v473, %v724
          %v733 = vmul.f32 %v477, %v725
          %v734 = vmul.f32 %v484, %v726
          %v735 = vmul.f32 %v488, %v727
          %v740 = vcombine.low %v732, %v733
          %v741 = vcombine.low %v734, %v735
          %v743 = vunpack.c.l.s4 1966171168
          %v744 = vunpack.c.0.s8 %v743
          %v745 = vlaneseq
          %v746 = vshrl.u32 %v745, 7
          %v747 = vsub.s32 %v744, %v746
          %v748 = vrot.slane %v740, %v747
          %v750 = vunpack.c.l.s4 1966171168
          %v751 = vunpack.c.0.s8 %v750
          %v752 = vlaneseq
          %v753 = vshrl.u32 %v752, 7
          %v754 = vsub.s32 %v751, %v753
          %v755 = vrot.slane %v741, %v754
          %v756 = vcombine.low %v748, %v755
          %v758 = vunpack.c.l.s4 1966171168
          %v759 = vunpack.c.0.s8 %v758
          %v760 = vlaneseq
          %v761 = vshrl.u32 %v760, 7
          %v762 = vsub.s32 %v759, %v761
          %v763 = vrot.slane %v756, %v762
          %s765 = scalar_lea.vmem [#allocation4], 4
          %766 = vst.msk [vmem:[%s765] ss:$8 sm:$0xf] %vm546, %v763
          %767 = vst.msk [vmem:[%s765] ss:$8 sm:$0x0] %vm546, %v763
          %768 = vrot.lane.b32.xlu0 %v473, 127
          %v769 = vpop.permute.xlu0 %768
          %770 = vrot.lane.b32.xlu0 %v477, 127
          %v771 = vpop.permute.xlu0 %770
          %772 = vrot.lane.b32.xlu0 %v484, 127
          %v773 = vpop.permute.xlu0 %772
          %774 = vrot.lane.b32.xlu0 %v488, 127
          %v775 = vpop.permute.xlu0 %774
          %vm776 = vcmp.lt.s32.totalorder %v315, 127
          %v777 = vsel %vm776, %v773, %v775
          %v778 = vsel %vm776, %v771, %v773
          %v779 = vsel %vm776, %v769, %v771
          %v780 = vsel %vm776, %v775, %v769
          %v781 = vrot.slane %v491, 5
          %v782 = vrot.slane %v492, 5
          %v783 = vrot.slane %v493, 5
          %v784 = vrot.slane %v494, 5
          %v789 = vmul.f32 %v779, %v781
          %v790 = vmul.f32 %v778, %v782
          %v791 = vmul.f32 %v777, %v783
          %v792 = vmul.f32 %v780, %v784
          %v797 = vcombine.low %v789, %v790
          %v798 = vcombine.low %v791, %v792
          %v800 = vunpack.c.l.s4 1966171168
          %v801 = vunpack.c.0.s8 %v800
          %v802 = vlaneseq
          %v803 = vshrl.u32 %v802, 7
          %v804 = vsub.s32 %v801, %v803
          %v805 = vrot.slane %v797, %v804
          %v807 = vunpack.c.l.s4 1966171168
          %v808 = vunpack.c.0.s8 %v807
          %v809 = vlaneseq
          %v810 = vshrl.u32 %v809, 7
          %v811 = vsub.s32 %v808, %v810
          %v812 = vrot.slane %v798, %v811
          %v813 = vcombine.low %v805, %v812
          %v815 = vunpack.c.l.s4 1966171168
          %v816 = vunpack.c.0.s8 %v815
          %v817 = vlaneseq
          %v818 = vshrl.u32 %v817, 7
          %v819 = vsub.s32 %v816, %v818
          %v820 = vrot.slane %v813, %v819
          %s822 = scalar_lea.vmem [#allocation4], 5
          %823 = vst.msk [vmem:[%s822] ss:$8 sm:$0xf] %vm546, %v820
          %824 = vst.msk [vmem:[%s822] ss:$8 sm:$0x0] %vm546, %v820
          %825 = vrot.lane.b32.xlu0 %v473, 113
          %v826 = vpop.permute.xlu0 %825
          %827 = vrot.lane.b32.xlu0 %v477, 113
          %v828 = vpop.permute.xlu0 %827
          %829 = vrot.lane.b32.xlu0 %v484, 113
          %v830 = vpop.permute.xlu0 %829
          %831 = vrot.lane.b32.xlu0 %v488, 113
          %v832 = vpop.permute.xlu0 %831
          %vm833 = vcmp.lt.s32.totalorder %v315, 113
          %v834 = vsel %vm833, %v830, %v832
          %v835 = vsel %vm833, %v828, %v830
          %v836 = vsel %vm833, %v826, %v828
          %v837 = vsel %vm833, %v832, %v826
          %v838 = vrot.slane %v491, 6
          %v839 = vrot.slane %v492, 6
          %v840 = vrot.slane %v493, 6
          %v841 = vrot.slane %v494, 6
          %v846 = vmul.f32 %v836, %v838
          %v847 = vmul.f32 %v835, %v839
          %v848 = vmul.f32 %v834, %v840
          %v849 = vmul.f32 %v837, %v841
          %v854 = vcombine.low %v846, %v847
          %v855 = vcombine.low %v848, %v849
          %v857 = vunpack.c.l.s4 1966171168
          %v858 = vunpack.c.0.s8 %v857
          %v859 = vlaneseq
          %v860 = vshrl.u32 %v859, 7
          %v861 = vsub.s32 %v858, %v860
          %v862 = vrot.slane %v854, %v861
          %v864 = vunpack.c.l.s4 1966171168
          %v865 = vunpack.c.0.s8 %v864
          %v866 = vlaneseq
          %v867 = vshrl.u32 %v866, 7
          %v868 = vsub.s32 %v865, %v867
          %v869 = vrot.slane %v855, %v868
          %v870 = vcombine.low %v862, %v869
          %v872 = vunpack.c.l.s4 1966171168
          %v873 = vunpack.c.0.s8 %v872
          %v874 = vlaneseq
          %v875 = vshrl.u32 %v874, 7
          %v876 = vsub.s32 %v873, %v875
          %v877 = vrot.slane %v870, %v876
          %s879 = scalar_lea.vmem [#allocation4], 6
          %880 = vst.msk [vmem:[%s879] ss:$8 sm:$0xf] %vm546, %v877
          %881 = vst.msk [vmem:[%s879] ss:$8 sm:$0x0] %vm546, %v877
          %882 = vrot.lane.b32.xlu0 %v473, 112
          %v883 = vpop.permute.xlu0 %882
          %884 = vrot.lane.b32.xlu0 %v477, 112
          %v885 = vpop.permute.xlu0 %884
          %886 = vrot.lane.b32.xlu0 %v484, 112
          %v887 = vpop.permute.xlu0 %886
          %888 = vrot.lane.b32.xlu0 %v488, 112
          %v889 = vpop.permute.xlu0 %888
          %vm890 = vcmp.lt.s32.totalorder %v315, 112
          %v891 = vsel %vm890, %v887, %v889
          %v892 = vsel %vm890, %v885, %v887
          %v893 = vsel %vm890, %v883, %v885
          %v894 = vsel %vm890, %v889, %v883
          %v895 = vrot.slane %v491, 7
          %v896 = vrot.slane %v492, 7
          %v897 = vrot.slane %v493, 7
          %v898 = vrot.slane %v494, 7
          %v903 = vmul.f32 %v893, %v895
          %v904 = vmul.f32 %v892, %v896
          %v905 = vmul.f32 %v891, %v897
          %v906 = vmul.f32 %v894, %v898
          %v911 = vcombine.low %v903, %v904
          %v912 = vcombine.low %v905, %v906
          %v914 = vunpack.c.l.s4 1966171168
          %v915 = vunpack.c.0.s8 %v914
          %v916 = vlaneseq
          %v917 = vshrl.u32 %v916, 7
          %v918 = vsub.s32 %v915, %v917
          %v919 = vrot.slane %v911, %v918
          %v921 = vunpack.c.l.s4 1966171168
          %v922 = vunpack.c.0.s8 %v921
          %v923 = vlaneseq
          %v924 = vshrl.u32 %v923, 7
          %v925 = vsub.s32 %v922, %v924
          %v926 = vrot.slane %v912, %v925
          %v927 = vcombine.low %v919, %v926
          %v929 = vunpack.c.l.s4 1966171168
          %v930 = vunpack.c.0.s8 %v929
          %v931 = vlaneseq
          %v932 = vshrl.u32 %v931, 7
          %v933 = vsub.s32 %v930, %v932
          %v934 = vrot.slane %v927, %v933
          %s936 = scalar_lea.vmem [#allocation4], 7
          %937 = vst.msk [vmem:[%s936] ss:$8 sm:$0xf] %vm546, %v934
          %938 = vst.msk [vmem:[%s936] ss:$8 sm:$0x0] %vm546, %v934
          %939 = vrot.lane.b32.xlu0 %v473, 111
          %v940 = vpop.permute.xlu0 %939
          %941 = vrot.lane.b32.xlu0 %v477, 111
          %v942 = vpop.permute.xlu0 %941
          %943 = vrot.lane.b32.xlu0 %v484, 111
          %v944 = vpop.permute.xlu0 %943
          %945 = vrot.lane.b32.xlu0 %v488, 111
          %v946 = vpop.permute.xlu0 %945
          %vm947 = vcmp.lt.s32.totalorder %v315, 111
          %v948 = vsel %vm947, %v944, %v946
          %v949 = vsel %vm947, %v942, %v944
          %v950 = vsel %vm947, %v940, %v942
          %v951 = vsel %vm947, %v946, %v940
          %v952 = vmul.f32 %v950, %v495
          %v953 = vmul.f32 %v949, %v496
          %v954 = vmul.f32 %v948, %v497
          %v955 = vmul.f32 %v951, %v498
          %v960 = vcombine.low %v952, %v953
          %v961 = vcombine.low %v954, %v955
          %v963 = vunpack.c.l.s4 1966171168
          %v964 = vunpack.c.0.s8 %v963
          %v965 = vlaneseq
          %v966 = vshrl.u32 %v965, 7
          %v967 = vsub.s32 %v964, %v966
          %v968 = vrot.slane %v960, %v967
          %v970 = vunpack.c.l.s4 1966171168
          %v971 = vunpack.c.0.s8 %v970
          %v972 = vlaneseq
          %v973 = vshrl.u32 %v972, 7
          %v974 = vsub.s32 %v971, %v973
          %v975 = vrot.slane %v961, %v974
          %v976 = vcombine.low %v968, %v975
          %v978 = vunpack.c.l.s4 1966171168
          %v979 = vunpack.c.0.s8 %v978
          %v980 = vlaneseq
          %v981 = vshrl.u32 %v980, 7
          %v982 = vsub.s32 %v979, %v981
          %v983 = vrot.slane %v976, %v982
          %s985 = scalar_lea.vmem [#allocation4], 32
          %986 = vst.msk [vmem:[%s985] ss:$8 sm:$0xf] %vm546, %v983
          %987 = vst.msk [vmem:[%s985] ss:$8 sm:$0x0] %vm546, %v983
          %s988 = scalar_lea.vmem [#allocation4], 33
          %989 = vst.msk [vmem:[%s988] ss:$8 sm:$0xf] %vm546, 1.0
          %990 = vst.msk [vmem:[%s988] ss:$8 sm:$0x0] %vm546, 1.0
          %v991 = vld [vmem:[#allocation9] sm:$0xff]
          %v992 = vld [vmem:[#allocation9 + $0x8] sm:$0xff]
          %v993 = vld [vmem:[#allocation4] sm:$0xff]
          %v994 = vld [vmem:[#allocation4 + $0x8] sm:$0xff]
          %v995 = vld [vmem:[#allocation4 + $0x10] sm:$0xff]
          %v996 = vld [vmem:[#allocation4 + $0x18] sm:$0xff]
          %v997 = vld [vmem:[#allocation4 + $0x20] sm:$0x3]
          %v998 = vld [vmem:[#allocation4 + $0x28] sm:$0x3]
          %v999 = vld [vmem:[#allocation4 + $0x30] sm:$0x3]
          %v1000 = vld [vmem:[#allocation4 + $0x38] sm:$0x3]
          %vm1001 = vcmask 80896
          %v1003 = vsel %vm1001, %v991, 0
          %v1006 = vsel %vm1001, %v992, 0
          %vm1008 = vcmask 1041408
          %v1010 = vsel %vm1008, %v997, 0
          %v1013 = vsel %vm1008, %v998, 0
          %v1016 = vsel %vm1008, %v999, 0
          %v1019 = vsel %vm1008, %v1000, 0
          %1021 = vmatprep.subr.mxu0 %v994
          %1022 = vmatpush1.msra.mxu0 %v993
          %1023 = vmatprep.subr.mxu0 %v1013
          %1024 = vmatpush1.msra.mxu0 %v1010
          %1025 = vmatprep.subr.mxu0 0.0
          %1026 = vmatpush1.msra.mxu0 0.0
          %1027 = vmatprep.subr.mxu0 0.0
          %1028 = vmatpush1.msra.mxu0 0.0
          %1029 = vmatprep.subr.mxu0 0.0
          %1030 = vmatpush1.msra.mxu0 0.0
          %1031 = vmatprep.subr.mxu0 0.0
          %1032 = vmatpush1.msra.mxu0 0.0
          %1033 = vmatprep.subr.mxu0 0.0
          %1034 = vmatpush1.msra.mxu0 0.0
          %1035 = vmatprep.subr.mxu0 0.0
          %1036 = vmatpush1.msra.mxu0 0.0
          %1037 = vmatprep.subr.mxu0 0.0
          %1038 = vmatpush1.msra.mxu0 0.0
          %1039 = vmatprep.subr.mxu0 0.0
          %1040 = vmatpush1.msra.mxu0 0.0
          %1041 = vmatprep.subr.mxu0 0.0
          %1042 = vmatpush1.msra.mxu0 0.0
          %1043 = vmatprep.subr.mxu0 0.0
          %1044 = vmatpush1.msra.mxu0 0.0
          %1045 = vmatprep.subr.mxu0 0.0
          %1046 = vmatpush1.msra.mxu0 0.0
          %1047 = vmatprep.subr.mxu0 0.0
          %1048 = vmatpush1.msra.mxu0 0.0
          %1049 = vmatprep.subr.mxu0 0.0
          %1050 = vmatpush1.msra.mxu0 0.0
          %1051 = vmatprep.subr.mxu0 0.0
          %1052 = vmatpush1.msra.mxu0 0.0
          %1053 = vmatprep.subr.mxu0 0.0
          %1054 = vmatpush1.msra.mxu0 0.0
          %1055 = vmatprep.subr.mxu0 0.0
          %1056 = vmatpush1.msra.mxu0 0.0
          %1057 = vmatprep.subr.mxu0 0.0
          %1058 = vmatpush1.msra.mxu0 0.0
          %1059 = vmatprep.subr.mxu0 0.0
          %1060 = vmatpush1.msra.mxu0 0.0
          %1061 = vmatprep.subr.mxu0 0.0
          %1062 = vmatpush1.msra.mxu0 0.0
          %1063 = vmatprep.subr.mxu0 0.0
          %1064 = vmatpush1.msra.mxu0 0.0
          %1065 = vmatprep.subr.mxu0 0.0
          %1066 = vmatpush1.msra.mxu0 0.0
          %1067 = vmatprep.subr.mxu0 0.0
          %1068 = vmatpush1.msra.mxu0 0.0
          %1069 = vmatprep.subr.mxu0 0.0
          %1070 = vmatpush1.msra.mxu0 0.0
          %1071 = vmatprep.subr.mxu0 0.0
          %1072 = vmatpush1.msra.mxu0 0.0
          %1073 = vmatprep.subr.mxu0 0.0
          %1074 = vmatpush1.msra.mxu0 0.0
          %1075 = vmatprep.subr.mxu0 0.0
          %1076 = vmatpush1.msra.mxu0 0.0
          %1077 = vmatprep.subr.mxu0 0.0
          %1078 = vmatpush1.msra.mxu0 0.0
          %1079 = vmatprep.subr.mxu0 0.0
          %1080 = vmatpush1.msra.mxu0 0.0
          %1081 = vmatprep.subr.mxu0 0.0
          %1082 = vmatpush1.msra.mxu0 0.0
          %1083 = vmatprep.subr.mxu0 0.0
          %1084 = vmatpush1.msra.mxu0 0.0
          %1085 = vmatprep.mubr.f32.mxu0 0.0
          %1086 = vmatmul.mubr.f32.gmra.mrb[0].mxu0 %v1003
          %v1087 = vpop.f32.mrb[0].mxu0
          %v1088 = vadd.f32 0.0, %v1087
          %v1089 = vpop.f32.mrb[0].mxu0
          %v1090 = vadd.f32 0.0, %v1089
          %1091 = vmatprep.mubr.f32.mxu0 0.0
          %1092 = vmatmul.mubr.f32.gmra.mrb[0].mxu0 %v1006
          %v1093 = vpop.f32.mrb[0].mxu0
          %v1094 = vadd.f32 0.0, %v1093
          %v1095 = vpop.f32.mrb[0].mxu0
          %v1096 = vadd.f32 0.0, %v1095
          %1097 = vdwg.mxu0
          %1098 = vmatprep.subr.mxu0 %v996
          %1099 = vmatpush1.msra.mxu0 %v995
          %1100 = vmatprep.subr.mxu0 %v1019
          %1101 = vmatpush1.msra.mxu0 %v1016
          %1102 = vmatprep.subr.mxu0 0.0
          %1103 = vmatpush1.msra.mxu0 0.0
          %1104 = vmatprep.subr.mxu0 0.0
          %1105 = vmatpush1.msra.mxu0 0.0
          %1106 = vmatprep.subr.mxu0 0.0
          %1107 = vmatpush1.msra.mxu0 0.0
          %1108 = vmatprep.subr.mxu0 0.0
          %1109 = vmatpush1.msra.mxu0 0.0
          %1110 = vmatprep.subr.mxu0 0.0
          %1111 = vmatpush1.msra.mxu0 0.0
          %1112 = vmatprep.subr.mxu0 0.0
          %1113 = vmatpush1.msra.mxu0 0.0
          %1114 = vmatprep.subr.mxu0 0.0
          %1115 = vmatpush1.msra.mxu0 0.0
          %1116 = vmatprep.subr.mxu0 0.0
          %1117 = vmatpush1.msra.mxu0 0.0
          %1118 = vmatprep.subr.mxu0 0.0
          %1119 = vmatpush1.msra.mxu0 0.0
          %1120 = vmatprep.subr.mxu0 0.0
          %1121 = vmatpush1.msra.mxu0 0.0
          %1122 = vmatprep.subr.mxu0 0.0
          %1123 = vmatpush1.msra.mxu0 0.0
          %1124 = vmatprep.subr.mxu0 0.0
          %1125 = vmatpush1.msra.mxu0 0.0
          %1126 = vmatprep.subr.mxu0 0.0
          %1127 = vmatpush1.msra.mxu0 0.0
          %1128 = vmatprep.subr.mxu0 0.0
          %1129 = vmatpush1.msra.mxu0 0.0
          %1130 = vmatprep.subr.mxu0 0.0
          %1131 = vmatpush1.msra.mxu0 0.0
          %1132 = vmatprep.subr.mxu0 0.0
          %1133 = vmatpush1.msra.mxu0 0.0
          %1134 = vmatprep.subr.mxu0 0.0
          %1135 = vmatpush1.msra.mxu0 0.0
          %1136 = vmatprep.subr.mxu0 0.0
          %1137 = vmatpush1.msra.mxu0 0.0
          %1138 = vmatprep.subr.mxu0 0.0
          %1139 = vmatpush1.msra.mxu0 0.0
          %1140 = vmatprep.subr.mxu0 0.0
          %1141 = vmatpush1.msra.mxu0 0.0
          %1142 = vmatprep.subr.mxu0 0.0
          %1143 = vmatpush1.msra.mxu0 0.0
          %1144 = vmatprep.subr.mxu0 0.0
          %1145 = vmatpush1.msra.mxu0 0.0
          %1146 = vmatprep.subr.mxu0 0.0
          %1147 = vmatpush1.msra.mxu0 0.0
          %1148 = vmatprep.subr.mxu0 0.0
          %1149 = vmatpush1.msra.mxu0 0.0
          %1150 = vmatprep.subr.mxu0 0.0
          %1151 = vmatpush1.msra.mxu0 0.0
          %1152 = vmatprep.subr.mxu0 0.0
          %1153 = vmatpush1.msra.mxu0 0.0
          %1154 = vmatprep.subr.mxu0 0.0
          %1155 = vmatpush1.msra.mxu0 0.0
          %1156 = vmatprep.subr.mxu0 0.0
          %1157 = vmatpush1.msra.mxu0 0.0
          %1158 = vmatprep.subr.mxu0 0.0
          %1159 = vmatpush1.msra.mxu0 0.0
          %1160 = vmatprep.subr.mxu0 0.0
          %1161 = vmatpush1.msra.mxu0 0.0
          %1162 = vmatprep.mubr.f32.mxu0 0.0
          %1163 = vmatmul.mubr.f32.gmra.mrb[0].mxu0 %v1003
          %v1164 = vpop.f32.mrb[0].mxu0
          %v1165 = vadd.f32 0.0, %v1164
          %v1166 = vpop.f32.mrb[0].mxu0
          %v1167 = vadd.f32 0.0, %v1166
          %1168 = vmatprep.mubr.f32.mxu0 0.0
          %1169 = vmatmul.mubr.f32.gmra.mrb[0].mxu0 %v1006
          %v1170 = vpop.f32.mrb[0].mxu0
          %v1171 = vadd.f32 0.0, %v1170
          %v1172 = vpop.f32.mrb[0].mxu0
          %v1173 = vadd.f32 0.0, %v1172
          %1174 = vdwg.mxu0
          %v1175 = vmax.f32 %v1088, 0.0
          %v1176 = vmax.f32 %v1090, 0.0
          %v1177 = vmax.f32 %v1165, 0.0
          %v1178 = vmax.f32 %v1167, 0.0
          %v1179 = vmax.f32 %v1094, 0.0
          %v1180 = vmax.f32 %v1096, 0.0
          %v1181 = vmax.f32 %v1171, 0.0
          %v1182 = vmax.f32 %v1173, 0.0
          %v1183 = vadd.f32 %v1175, %v1177
          %v1184 = vadd.f32 %v1176, %v1178
          %v1185 = vadd.f32 %v1179, %v1181
          %v1186 = vadd.f32 %v1180, %v1182
          %v1187 = vld [vmem:[#allocation11] sm:$0xff]
          %v1188 = vld [vmem:[#allocation11 + $0x8] sm:$0x1]
          %vm1189 = vcmask 130048
          %v1191 = vsel %vm1189, %v1187, 0
          %v1194 = vsel %vm1189, %v1188, 0
          %1196 = vmatprep.subr.mxu0 %v1184
          %1197 = vmatpush1.msra.mxu0 %v1183
          %1198 = vmatprep.subr.mxu0 %v1186
          %1199 = vmatpush1.msra.mxu0 %v1185
          %1200 = vmatprep.subr.mxu0 0.0
          %1201 = vmatpush1.msra.mxu0 0.0
          %1202 = vmatprep.subr.mxu0 0.0
          %1203 = vmatpush1.msra.mxu0 0.0
          %1204 = vmatprep.subr.mxu0 0.0
          %1205 = vmatpush1.msra.mxu0 0.0
          %1206 = vmatprep.subr.mxu0 0.0
          %1207 = vmatpush1.msra.mxu0 0.0
          %1208 = vmatprep.subr.mxu0 0.0
          %1209 = vmatpush1.msra.mxu0 0.0
          %1210 = vmatprep.subr.mxu0 0.0
          %1211 = vmatpush1.msra.mxu0 0.0
          %1212 = vmatprep.subr.mxu0 0.0
          %1213 = vmatpush1.msra.mxu0 0.0
          %1214 = vmatprep.subr.mxu0 0.0
          %1215 = vmatpush1.msra.mxu0 0.0
          %1216 = vmatprep.subr.mxu0 0.0
          %1217 = vmatpush1.msra.mxu0 0.0
          %1218 = vmatprep.subr.mxu0 0.0
          %1219 = vmatpush1.msra.mxu0 0.0
          %1220 = vmatprep.subr.mxu0 0.0
          %1221 = vmatpush1.msra.mxu0 0.0
          %1222 = vmatprep.subr.mxu0 0.0
          %1223 = vmatpush1.msra.mxu0 0.0
          %1224 = vmatprep.subr.mxu0 0.0
          %1225 = vmatpush1.msra.mxu0 0.0
          %1226 = vmatprep.subr.mxu0 0.0
          %1227 = vmatpush1.msra.mxu0 0.0
          %1228 = vmatprep.subr.mxu0 0.0
          %1229 = vmatpush1.msra.mxu0 0.0
          %1230 = vmatprep.subr.mxu0 0.0
          %1231 = vmatpush1.msra.mxu0 0.0
          %1232 = vmatprep.subr.mxu0 0.0
          %1233 = vmatpush1.msra.mxu0 0.0
          %1234 = vmatprep.subr.mxu0 0.0
          %1235 = vmatpush1.msra.mxu0 0.0
          %1236 = vmatprep.subr.mxu0 0.0
          %1237 = vmatpush1.msra.mxu0 0.0
          %1238 = vmatprep.subr.mxu0 0.0
          %1239 = vmatpush1.msra.mxu0 0.0
          %1240 = vmatprep.subr.mxu0 0.0
          %1241 = vmatpush1.msra.mxu0 0.0
          %1242 = vmatprep.subr.mxu0 0.0
          %1243 = vmatpush1.msra.mxu0 0.0
          %1244 = vmatprep.subr.mxu0 0.0
          %1245 = vmatpush1.msra.mxu0 0.0
          %1246 = vmatprep.subr.mxu0 0.0
          %1247 = vmatpush1.msra.mxu0 0.0
          %1248 = vmatprep.subr.mxu0 0.0
          %1249 = vmatpush1.msra.mxu0 0.0
          %1250 = vmatprep.subr.mxu0 0.0
          %1251 = vmatpush1.msra.mxu0 0.0
          %1252 = vmatprep.subr.mxu0 0.0
          %1253 = vmatpush1.msra.mxu0 0.0
          %1254 = vmatprep.subr.mxu0 0.0
          %1255 = vmatpush1.msra.mxu0 0.0
          %1256 = vmatprep.subr.mxu0 0.0
          %1257 = vmatpush1.msra.mxu0 0.0
          %1258 = vmatprep.subr.mxu0 0.0
          %1259 = vmatpush1.msra.mxu0 0.0
          %1260 = vmatprep.mubr.f32.mxu0 0.0
          %1261 = vmatmul.mubr.f32.gmra.mrb[0].mxu0 %v1191
          %v1262 = vpop.f32.mrb[0].mxu0
          %v1263 = vadd.f32 0.0, %v1262
          %v1264 = vpop.f32.mrb[0].mxu0
          %v1265 = vadd.f32 0.0, %v1264
          %1266 = vmatprep.mubr.f32.mxu0 0.0
          %1267 = vmatmul.mubr.f32.gmra.mrb[0].mxu0 %v1194
          %v1268 = vpop.f32.mrb[0].mxu0
          %v1269 = vadd.f32 0.0, %v1268
          %v1270 = vpop.f32.mrb[0].mxu0
          %v1271 = vadd.f32 0.0, %v1270
          %1272 = vdwg.mxu0
          %1273 = vrot.lane.b32.xlu0 %v1263, 17
          %v1274 = vpop.permute.xlu0 %1273
          %1275 = vrot.lane.b32.xlu0 %v1265, 17
          %v1276 = vpop.permute.xlu0 %1275
          %v1277 = vsel %vm507, %v1274, %v1276
          %v1278 = vsel %vm507, %v1276, %v1274
          %v1279 = vmul.f32 %v1278, %v491
          %v1280 = vmul.f32 %v1277, %v492
          %v1281 = vadd.f32 %v1279, 0.0
          %v1282 = vadd.f32 %v1280, 0.0
          %v1285 = vrot.slane %v1263, 1
          %v1286 = vrot.slane %v1265, 1
          %1289 = vrot.lane.b32.xlu0 %v1285, 16
          %v1290 = vpop.permute.xlu0 %1289
          %1291 = vrot.lane.b32.xlu0 %v1286, 16
          %v1292 = vpop.permute.xlu0 %1291
          %v1293 = vsel %vm557, %v1290, %v1292
          %v1294 = vsel %vm557, %v1292, %v1290
          %v1295 = vmul.f32 %v1294, %v566
          %v1296 = vmul.f32 %v1293, %v567
          %v1297 = vadd.f32 %v1281, %v1295
          %v1298 = vadd.f32 %v1282, %v1296
          %v1299 = vrot.slane %v1263, 2
          %v1300 = vrot.slane %v1265, 2
          %1303 = vrot.lane.b32.xlu0 %v1299, 15
          %v1304 = vpop.permute.xlu0 %1303
          %1305 = vrot.lane.b32.xlu0 %v1300, 15
          %v1306 = vpop.permute.xlu0 %1305
          %v1307 = vsel %vm618, %v1304, %v1306
          %v1308 = vsel %vm618, %v1306, %v1304
          %v1309 = vmul.f32 %v1308, %v623
          %v1310 = vmul.f32 %v1307, %v624
          %v1311 = vadd.f32 %v1297, %v1309
          %v1312 = vadd.f32 %v1298, %v1310
          %v1313 = vrot.slane %v1263, 3
          %v1314 = vrot.slane %v1265, 3
          %1317 = vrot.lane.b32.xlu0 %v1313, 1
          %v1318 = vpop.permute.xlu0 %1317
          %1319 = vrot.lane.b32.xlu0 %v1314, 1
          %v1320 = vpop.permute.xlu0 %1319
          %v1321 = vsel %vm675, %v1318, %v1320
          %v1322 = vsel %vm675, %v1320, %v1318
          %v1323 = vmul.f32 %v1322, %v680
          %v1324 = vmul.f32 %v1321, %v681
          %v1325 = vadd.f32 %v1311, %v1323
          %v1326 = vadd.f32 %v1312, %v1324
          %v1327 = vmul.f32 %v1263, %v491
          %v1328 = vmul.f32 %v1265, %v492
          %v1331 = vrot.slane %v1327, 4
          %v1332 = vrot.slane %v1328, 4
          %v1335 = vadd.f32 %v1325, %v1331
          %v1336 = vadd.f32 %v1326, %v1332
          %v1337 = vrot.slane %v1263, 5
          %v1338 = vrot.slane %v1265, 5
          %1341 = vrot.lane.b32.xlu0 %v1337, 127
          %v1342 = vpop.permute.xlu0 %1341
          %1343 = vrot.lane.b32.xlu0 %v1338, 127
          %v1344 = vpop.permute.xlu0 %1343
          %v1345 = vsel %vm776, %v1342, %v1344
          %v1346 = vsel %vm776, %v1344, %v1342
          %v1347 = vmul.f32 %v1345, %v781
          %v1348 = vmul.f32 %v1346, %v782
          %v1349 = vadd.f32 %v1335, %v1347
          %v1350 = vadd.f32 %v1336, %v1348
          %v1351 = vrot.slane %v1263, 6
          %v1352 = vrot.slane %v1265, 6
          %1355 = vrot.lane.b32.xlu0 %v1351, 113
          %v1356 = vpop.permute.xlu0 %1355
          %1357 = vrot.lane.b32.xlu0 %v1352, 113
          %v1358 = vpop.permute.xlu0 %1357
          %v1359 = vsel %vm833, %v1356, %v1358
          %v1360 = vsel %vm833, %v1358, %v1356
          %v1361 = vmul.f32 %v1359, %v838
          %v1362 = vmul.f32 %v1360, %v839
          %v1363 = vadd.f32 %v1349, %v1361
          %v1364 = vadd.f32 %v1350, %v1362
          %v1365 = vrot.slane %v1263, 7
          %v1366 = vrot.slane %v1265, 7
          %1369 = vrot.lane.b32.xlu0 %v1365, 112
          %v1370 = vpop.permute.xlu0 %1369
          %1371 = vrot.lane.b32.xlu0 %v1366, 112
          %v1372 = vpop.permute.xlu0 %1371
          %v1373 = vsel %vm890, %v1370, %v1372
          %v1374 = vsel %vm890, %v1372, %v1370
          %v1375 = vmul.f32 %v1373, %v895
          %v1376 = vmul.f32 %v1374, %v896
          %v1377 = vadd.f32 %v1363, %v1375
          %v1378 = vadd.f32 %v1364, %v1376
          %1379 = vrot.lane.b32.xlu0 %v1269, 111
          %v1380 = vpop.permute.xlu0 %1379
          %1381 = vrot.lane.b32.xlu0 %v1271, 111
          %v1382 = vpop.permute.xlu0 %1381
          %v1383 = vsel %vm947, %v1380, %v1382
          %v1384 = vsel %vm947, %v1382, %v1380
          %v1385 = vmul.f32 %v1383, %v495
          %v1386 = vmul.f32 %v1384, %v496
          %v1387 = vadd.f32 %v1377, %v1385
          %v1388 = vadd.f32 %v1378, %v1386
          %v1389 = vld [vmem:[#allocation5] sm:$0x1]
          %v1390 = vmul.f32 %v1389, 2.0
          %1392 = vset.pattern.permute.xlu0 0
          %1393 = vperm.xlu0 %1392, %v1390
          %v1394 = vpop.permute.xlu0 %1393
          %v1396 = vlaneseq
          %v1397 = vshrl.u32 %v1396, 7
          %v1398 = vsub.s32 0, %v1397
          %v1399 = vrot.slane %v1394, %v1398
          %v1400 = vadd.f32 %v1387, %v1399
          %v1401 = vadd.f32 %v1388, %v1399
          %v1404 = vcombine.low %v1400, %v1401
          %v1406 = vunpack.c.l.s4 1966171168
          %v1407 = vunpack.c.0.s8 %v1406
          %v1408 = vlaneseq
          %v1409 = vshrl.u32 %v1408, 7
          %v1410 = vsub.s32 %v1407, %v1409
          %v1411 = vrot.slane %v1404, %v1410
          %v1413 = vunpack.c.l.s4 1966171168
          %v1414 = vunpack.c.0.s8 %v1413
          %v1415 = vlaneseq
          %v1416 = vshrl.u32 %v1415, 7
          %v1417 = vsub.s32 %v1414, %v1416
          %v1418 = vrot.slane %v1411, %v1417
          %1420 = vst.msk [vmem:[%s302] sm:$0x3] %vm426, %v1418
        $region64: #{tpu_custom_call.1} parent=39 // pred_fallthru
          _
        %s1421 = sand.u32 %s158, 1
        %s1422 = scalar_lea.sflag [#allocation8], %s1421
        %s1423 = sand.u32 %s158, 1
        %s1424 = smul.addr %s1423, 2
        %s1425 = scalar_lea.vmem [#allocation14], %s1424
        // Predicated region
        $region65: #{tpu_custom_call.1} parent=39 // pred_check
          %p1426 = pneg %p168
        $region66: #{tpu_custom_call.1} parent=39 // pred_check_branch
          %1428 = sbr.rel (%p1426) target = $region68
        $region67: #{tpu_custom_call.1} parent=39 // pred_region
          %s1430 = ssub.s32 32, 32
          %1431 = vsyncadd %s1422, %s1430
          %s1432 = smul.addr %s30, 2
          %s1433 = smul.addr %s1432, 16
          %s1434 = scalar_lea.hbm %s5, %s1433
          %s1436 = sshll.u32 %s1425, 4
          %s1437 = int_to_ptr.vmem [resolvable:$true] %s1436
          %1439 = dma.vmem_to_hbm [thread:$0]  %s1437, 32, %s1434, %s1422
        $region68: #{tpu_custom_call.1} parent=39 // pred_fallthru
          _
      $region40: #{tpu_custom_call.1} parent=5 // pred_fallthru
        _
      %p1440 = scmp.le.s32.totalorder 2, %s21
      // Predicated region
      $region69: #{tpu_custom_call.1} parent=5 // pred_check
        %p1441 = pneg %p1440
      $region70: #{tpu_custom_call.1} parent=5 // pred_check_branch
        %1443 = sbr.rel (%p1441) target = $region72
      $region71: #{tpu_custom_call.1} parent=5 // pred_region
        %s1444 = ssub.s32 %s21, 2
        // Predicated region
        $region73: #{tpu_custom_call.1} parent=71 // pred_check
          %p1445 = pneg %p174
        $region74: #{tpu_custom_call.1} parent=71 // pred_check_branch
          %1447 = sbr.rel (%p1445) target = $region76
        $region75: #{tpu_custom_call.1} parent=71 // pred_region
          %s1448 = sand.u32 %s159, 1
          %s1449 = scalar_lea.sflag [#allocation8], %s1448
          %s1450 = sand.u32 %s159, 1
          %s1451 = smul.addr %s1450, 2
          %s1452 = scalar_lea.vmem [#allocation14], %s1451
          %1453 = dma.done %s1449, 32
        $region76: #{tpu_custom_call.1} parent=71 // pred_fallthru
          _
      $region72: #{tpu_custom_call.1} parent=5 // pred_fallthru
        _
    $region6: #{tpu_custom_call.1} parent=1 // loop_footer
      %s25 = sadd.s32 1, %s21
    $region7: #{tpu_custom_call.1} parent=1 // loop_footer_branch
      %20 = sbr.rel target = $region3
    $region8: #{tpu_custom_call.1} parent=1 // loop_exit
      _
    %1454 = vsyncpa [#allocation7], 1
    %s1455 = scalar_lea.sflag [#allocation7], 1
    %1456 = vsyncpa %s1455, 1
    %1457 = vsyncpa [#allocation10], 1
    %1458 = vsyncpa [#allocation13], 1
    %1459 = vsyncpa [#allocation8], 1
    %s1460 = scalar_lea.sflag [#allocation8], 1
    %1461 = vsyncpa %s1460, 1

</llo_original>
